<compile_context>
chip_gen: v7x
topology: tpu7x:2x2x1
jax: 0.10.0
libtpu: 0.0.40
codegen_flags: <defaults>
</compile_context>

<pallas_src>
import jax
import jax.numpy as jnp
from jax.experimental import pallas as pl
from jax.experimental.pallas import tpu as pltpu

INPUT_SIZE = 1 * 28 * 28   # 784
OUT_PAD = 896              # 7 * 128 lanes (784 padded up for unmasked stores)
IN_F, H1, H2, H3 = 64, 128, 256, 512


def _round_up(n, m):
    return (n + m - 1) // m * m


def decoder_kernel(x_ref, w1_ref, b1_ref, w2_ref, b2_ref, w3_ref, w4_ref, o_ref):
    # Fused 4-layer MLP; matmuls in bf16 with f32 accumulation, pointwise in f32.
    h = jnp.dot(x_ref[...], w1_ref[...], preferred_element_type=jnp.float32)
    h = jnp.maximum(h + b1_ref[...], 0.0).astype(jnp.bfloat16)            # relu(dec_3)

    h = jnp.dot(h, w2_ref[...], preferred_element_type=jnp.float32)
    h = jnp.maximum(h + b2_ref[...], 0.0).astype(jnp.bfloat16)            # relu(new_dec1)

    h = jnp.dot(h, w3_ref[...], preferred_element_type=jnp.float32)
    h = jnp.maximum(h, 0.0).astype(jnp.bfloat16)                          # relu(new_dec2)

    logits = jnp.dot(h, w4_ref[...], preferred_element_type=jnp.float32)  # dec_4
    # bf16 store halves output HBM writeback (sigmoid lives in [0,1], ~3e-3 abs err).
    o_ref[...] = jax.nn.sigmoid(logits).astype(o_ref.dtype)


def _pick_tiling(B):
    """Choose (batch tile TB, padded batch Bp)."""
    B = max(B, 1)
    if B <= 256:
        # Single tile; multiple of 16 so bf16 sublane pairs are fully packed.
        TB = _round_up(B, 16)
        return TB, TB
    # Large batch: tiles are multiples of 256 (matches 2x256 MXU; also /128 for v5e).
    # Take the largest of {256, 512, 1024} that adds no padding beyond round_up(B,256)
    # and keeps >= 2 grid steps so v7x can shard across both TensorCores.
    Bp = _round_up(B, 256)
    TB = 256
    for cand in (512, 1024):
        if Bp % cand == 0 and Bp // cand >= 2:
            TB = cand
    return TB, Bp


@jax.jit
def decoder_forward(x, kparams):
    """x: (B, 64) f32.  kparams: bf16 weights (w4 padded to 896) + f32 biases."""
    w1, b1, w2, b2, w3, w4p = kparams
    B = x.shape[0]
    TB, Bp = _pick_tiling(B)
    grid = (Bp // TB,)

    xp = jnp.pad(x, ((0, Bp - B), (0, 0))).astype(jnp.bfloat16)

    # Weights/biases stay resident across grid steps (same block every iteration),
    # so a single pipeline buffer suffices.
    resident = lambda shape: pl.BlockSpec(shape, lambda i: (0, 0),
                                          pipeline_mode=pl.Buffered(1))

    weight_bytes = (IN_F * H1 + H1 * H2 + H2 * H3 + H3 * OUT_PAD) * 2 + (H1 + H2) * 4
    flops = 2 * Bp * (IN_F * H1 + H1 * H2 + H2 * H3 + H3 * OUT_PAD)
    bytes_accessed = Bp * IN_F * 2 + weight_bytes + Bp * OUT_PAD * 2      # bf16 output

    # Explicit scoped-VMEM budget (generous, with headroom) so larger tiles don't hit
    # the 16 MiB v5e default or spill silently; stays under v7x's 64 MiB physical.
    vmem_est = (
        2 * TB * IN_F * 2              # x tile, double-buffered bf16
        + 2 * TB * OUT_PAD * 2         # out tile, double-buffered bf16
        + weight_bytes                 # resident weights, single-buffered
        + TB * (H1 + H2 + H3 + OUT_PAD) * 6   # f32 + bf16 intermediates
    )
    vmem_limit = int(min(max(2 * vmem_est, 24 << 20), 48 << 20))

    out2d = pl.pallas_call(
        decoder_kernel,
        out_shape=jax.ShapeDtypeStruct((Bp, OUT_PAD), jnp.bfloat16),
        grid=grid,
        in_specs=[
            pl.BlockSpec((TB, IN_F), lambda i: (i, 0)),  # x tile (pipelined over batch)
            resident(w1.shape),                          # (64, 128)   bf16
            resident(b1.shape),                          # (1, 128)    f32
            resident(w2.shape),                          # (128, 256)  bf16
            resident(b2.shape),                          # (1, 256)    f32
            resident(w3.shape),                          # (256, 512)  bf16
            resident(w4p.shape),                         # (512, 896)  bf16 (padded)
        ],
        out_specs=pl.BlockSpec((TB, OUT_PAD), lambda i: (i, 0)),
        compiler_params=pltpu.CompilerParams(
            dimension_semantics=("parallel",),
            vmem_limit_bytes=vmem_limit,
        ),
        cost_estimate=pl.CostEstimate(
            flops=flops,
            transcendentals=Bp * OUT_PAD,
            bytes_accessed=bytes_accessed,
        ),
    )(xp, w1, b1, w2, b2, w3, w4p)

    # Strip batch/lane padding, cast back to f32 for downstream consumers, and match
    # PyTorch's x.reshape(B, 1, 28, 28) (NCHW).
    return out2d[:B, :INPUT_SIZE].astype(jnp.float32).reshape(B, 1, 28, 28)


def init_params(key):
    """torch.nn.Linear default init: U(-1/sqrt(fan_in), 1/sqrt(fan_in)).
    Weights stored transposed, i.e. (in_features, out_features). f32 reference params."""
    def linear(k, fan_in, fan_out, bias):
        kw, kb = jax.random.split(k)
        bound = 1.0 / jnp.sqrt(fan_in)
        w = jax.random.uniform(kw, (fan_in, fan_out), jnp.float32, -bound, bound)
        if bias:
            b = jax.random.uniform(kb, (1, fan_out), jnp.float32, -bound, bound)
            return w, b
        return (w,)

    k1, k2, k3, k4 = jax.random.split(key, 4)
    w1, b1 = linear(k1, IN_F, H1, True)          # dec_3
    w2, b2 = linear(k2, H1, H2, True)            # new_dec1
    (w3,) = linear(k3, H2, H3, False)            # new_dec2 (bias=False)
    (w4,) = linear(k4, H3, INPUT_SIZE, False)    # dec_4 (bias=False)
    return (w1, b1, w2, b2, w3, w4)


def prepare_params(params):
    """f32 reference params -> kernel params: bf16 weights, w4 lane-padded to 896,
    biases kept in f32 (bias add happens in f32 inside the kernel)."""
    w1, b1, w2, b2, w3, w4 = params
    w4p = jnp.pad(w4, ((0, 0), (0, OUT_PAD - INPUT_SIZE)))
    return (
        w1.astype(jnp.bfloat16), b1.astype(jnp.float32),
        w2.astype(jnp.bfloat16), b2.astype(jnp.float32),
        w3.astype(jnp.bfloat16), w4p.astype(jnp.bfloat16),
    )


def reference_forward(x, params):
    w1, b1, w2, b2, w3, w4 = params
    h = jax.nn.relu(x @ w1 + b1)
    h = jax.nn.relu(h @ w2 + b2)
    h = jax.nn.relu(h @ w3)
    y = jax.nn.sigmoid(h @ w4)
    return y.reshape(x.shape[0], 1, 28, 28)


if __name__ == "__main__":
    key = jax.random.PRNGKey(0)
    kx, kp = jax.random.split(key)

    B = 8
    x = jax.random.normal(kx, (B, 64), dtype=jnp.float32)
    params = init_params(kp)
    kparams = jax.tree_util.tree_map(jax.device_put, prepare_params(params))

    out = decoder_forward(x, kparams)
    out = jax.block_until_ready(out)

    assert out.shape == (B, 1, 28, 28), out.shape
    ref = reference_forward(x, params)
    # bf16 matmuls/output vs f32 reference; sigmoid output lives in [0, 1].
    assert jnp.allclose(out, ref, atol=2e-2, rtol=0.0), "mismatch vs reference"
    assert jnp.isfinite(out).all()

    print("KERNEL_OK")
</pallas_src>

<mosaic_0001>
module attributes {stable_mosaic.version = 11 : i64} {
  func.func @decoder_kernel(%arg0: i32, %arg1: memref<16x64xbf16, #tpu.memory_space<vmem>>, %arg2: memref<64x128xbf16, #tpu.memory_space<vmem>>, %arg3: memref<1x128xf32, #tpu.memory_space<vmem>>, %arg4: memref<128x256xbf16, #tpu.memory_space<vmem>>, %arg5: memref<1x256xf32, #tpu.memory_space<vmem>>, %arg6: memref<256x512xbf16, #tpu.memory_space<vmem>>, %arg7: memref<512x896xbf16, #tpu.memory_space<vmem>>, %arg8: memref<16x896xbf16, #tpu.memory_space<vmem>>) attributes {dimension_semantics = [#tpu.dimension_semantics<parallel>], iteration_bounds = array<i64: 1>, scalar_prefetch = 0 : i64, scratch_operands = 0 : i64, tpu.core_type = #tpu.core_type<tc>, window_params = [{transform_indices = @transform_0, window_bounds = array<i64: 16, 64>}, {pipeline_mode = #tpu.pipeline_mode<synchronous>, transform_indices = @transform_1, window_bounds = array<i64: 64, 128>}, {pipeline_mode = #tpu.pipeline_mode<synchronous>, transform_indices = @transform_2, window_bounds = array<i64: 1, 128>}, {pipeline_mode = #tpu.pipeline_mode<synchronous>, transform_indices = @transform_3, window_bounds = array<i64: 128, 256>}, {pipeline_mode = #tpu.pipeline_mode<synchronous>, transform_indices = @transform_4, window_bounds = array<i64: 1, 256>}, {pipeline_mode = #tpu.pipeline_mode<synchronous>, transform_indices = @transform_5, window_bounds = array<i64: 256, 512>}, {pipeline_mode = #tpu.pipeline_mode<synchronous>, transform_indices = @transform_6, window_bounds = array<i64: 512, 896>}, {transform_indices = @transform_7, window_bounds = array<i64: 16, 896>}]} {
    %c0 = arith.constant 0 : index
    %c0_0 = arith.constant 0 : index
    %0 = vector.load %arg1[%c0, %c0_0] : memref<16x64xbf16, #tpu.memory_space<vmem>>, vector<16x64xbf16>
    %c0_1 = arith.constant 0 : index
    %c0_2 = arith.constant 0 : index
    %1 = vector.load %arg2[%c0_1, %c0_2] : memref<64x128xbf16, #tpu.memory_space<vmem>>, vector<64x128xbf16>
    %cst = arith.constant dense<0.000000e+00> : vector<16x128xf32>
    %2 = tpu.matmul %0, %1, %cst {dimension_numbers = #tpu.dot_dimension_numbers<[1], [0], [0], [1], [0, 0, 1, 1], [], []>} : vector<16x64xbf16>, vector<64x128xbf16>, vector<16x128xf32> -> vector<16x128xf32>
    %c0_3 = arith.constant 0 : index
    %c0_4 = arith.constant 0 : index
    %3 = vector.load %arg3[%c0_3, %c0_4] : memref<1x128xf32, #tpu.memory_space<vmem>>, vector<1x128xf32>
    %4 = vector.broadcast %3 : vector<1x128xf32> to vector<16x128xf32>
    %5 = arith.addf %2, %4 : vector<16x128xf32>
    %cst_5 = arith.constant 0.000000e+00 : f32
    %6 = vector.broadcast %cst_5 : f32 to vector<16x128xf32>
    %7 = arith.maximumf %5, %6 : vector<16x128xf32>
    %8 = arith.truncf %7 : vector<16x128xf32> to vector<16x128xbf16>
    %c0_6 = arith.constant 0 : index
    %c0_7 = arith.constant 0 : index
    %9 = vector.load %arg4[%c0_6, %c0_7] : memref<128x256xbf16, #tpu.memory_space<vmem>>, vector<128x256xbf16>
    %cst_8 = arith.constant dense<0.000000e+00> : vector<16x256xf32>
    %10 = tpu.matmul %8, %9, %cst_8 {dimension_numbers = #tpu.dot_dimension_numbers<[1], [0], [0], [1], [0, 0, 1, 1], [], []>} : vector<16x128xbf16>, vector<128x256xbf16>, vector<16x256xf32> -> vector<16x256xf32>
    %c0_9 = arith.constant 0 : index
    %c0_10 = arith.constant 0 : index
    %11 = vector.load %arg5[%c0_9, %c0_10] : memref<1x256xf32, #tpu.memory_space<vmem>>, vector<1x256xf32>
    %12 = vector.broadcast %11 : vector<1x256xf32> to vector<16x256xf32>
    %13 = arith.addf %10, %12 : vector<16x256xf32>
    %cst_11 = arith.constant 0.000000e+00 : f32
    %14 = vector.broadcast %cst_11 : f32 to vector<16x256xf32>
    %15 = arith.maximumf %13, %14 : vector<16x256xf32>
    %16 = arith.truncf %15 : vector<16x256xf32> to vector<16x256xbf16>
    %c0_12 = arith.constant 0 : index
    %c0_13 = arith.constant 0 : index
    %17 = vector.load %arg6[%c0_12, %c0_13] : memref<256x512xbf16, #tpu.memory_space<vmem>>, vector<256x512xbf16>
    %cst_14 = arith.constant dense<0.000000e+00> : vector<16x512xf32>
    %18 = tpu.matmul %16, %17, %cst_14 {dimension_numbers = #tpu.dot_dimension_numbers<[1], [0], [0], [1], [0, 0, 1, 1], [], []>} : vector<16x256xbf16>, vector<256x512xbf16>, vector<16x512xf32> -> vector<16x512xf32>
    %cst_15 = arith.constant 0.000000e+00 : f32
    %19 = vector.broadcast %cst_15 : f32 to vector<16x512xf32>
    %20 = arith.maximumf %18, %19 : vector<16x512xf32>
    %21 = arith.truncf %20 : vector<16x512xf32> to vector<16x512xbf16>
    %c0_16 = arith.constant 0 : index
    %c0_17 = arith.constant 0 : index
    %22 = vector.load %arg7[%c0_16, %c0_17] : memref<512x896xbf16, #tpu.memory_space<vmem>>, vector<512x896xbf16>
    %cst_18 = arith.constant dense<0.000000e+00> : vector<16x896xf32>
    %23 = tpu.matmul %21, %22, %cst_18 {dimension_numbers = #tpu.dot_dimension_numbers<[1], [0], [0], [1], [0, 0, 1, 1], [], []>} : vector<16x512xbf16>, vector<512x896xbf16>, vector<16x896xf32> -> vector<16x896xf32>
    %24 = arith.negf %23 : vector<16x896xf32>
    %25 = math.exp %24 : vector<16x896xf32>
    %cst_19 = arith.constant 1.000000e+00 : f32
    %26 = vector.broadcast %cst_19 : f32 to vector<16x896xf32>
    %27 = arith.addf %26, %25 : vector<16x896xf32>
    %28 = arith.divf %26, %27 : vector<16x896xf32>
    %29 = arith.truncf %28 : vector<16x896xf32> to vector<16x896xbf16>
    %c0_20 = arith.constant 0 : index
    %c0_21 = arith.constant 0 : index
    %30 = vector.load %arg8[%c0_20, %c0_21] : memref<16x896xbf16, #tpu.memory_space<vmem>>, vector<16x896xbf16>
    tpu.vector_store %arg8[%c0_20, %c0_21], %29 {strides = array<i32>} : memref<16x896xbf16, #tpu.memory_space<vmem>>, vector<16x896xbf16>,
    return
  }
  func.func @transform_0(%arg0: i32) -> (i32, i32) {
    %c0_i32 = arith.constant 0 : i32
    %c0_i32_0 = arith.constant 0 : i32
    return %arg0, %c0_i32 : i32, i32
  }
  func.func @transform_1(%arg0: i32) -> (i32, i32) {
    %c0_i32 = arith.constant 0 : i32
    %c0_i32_0 = arith.constant 0 : i32
    %c0_i32_1 = arith.constant 0 : i32
    return %c0_i32, %c0_i32_0 : i32, i32
  }
  func.func @transform_2(%arg0: i32) -> (i32, i32) {
    %c0_i32 = arith.constant 0 : i32
    %c0_i32_0 = arith.constant 0 : i32
    %c0_i32_1 = arith.constant 0 : i32
    return %c0_i32, %c0_i32_0 : i32, i32
  }
  func.func @transform_3(%arg0: i32) -> (i32, i32) {
    %c0_i32 = arith.constant 0 : i32
    %c0_i32_0 = arith.constant 0 : i32
    %c0_i32_1 = arith.constant 0 : i32
    return %c0_i32, %c0_i32_0 : i32, i32
  }
  func.func @transform_4(%arg0: i32) -> (i32, i32) {
    %c0_i32 = arith.constant 0 : i32
    %c0_i32_0 = arith.constant 0 : i32
    %c0_i32_1 = arith.constant 0 : i32
    return %c0_i32, %c0_i32_0 : i32, i32
  }
  func.func @transform_5(%arg0: i32) -> (i32, i32) {
    %c0_i32 = arith.constant 0 : i32
    %c0_i32_0 = arith.constant 0 : i32
    %c0_i32_1 = arith.constant 0 : i32
    return %c0_i32, %c0_i32_0 : i32, i32
  }
  func.func @transform_6(%arg0: i32) -> (i32, i32) {
    %c0_i32 = arith.constant 0 : i32
    %c0_i32_0 = arith.constant 0 : i32
    %c0_i32_1 = arith.constant 0 : i32
    return %c0_i32, %c0_i32_0 : i32, i32
  }
  func.func @transform_7(%arg0: i32) -> (i32, i32) {
    %c0_i32 = arith.constant 0 : i32
    %c0_i32_0 = arith.constant 0 : i32
    return %arg0, %c0_i32 : i32, i32
  }
}

</mosaic_0001>

<llo_original>
// kernel: decoder_forward.1
$region0: #{decoder_forward.1}
  #allocation0 [shape = 'u32[]', space=smem, size = 0x4, offset = 0x4, fixed_abs, tag = 'smem constant byte address 0x4 - core index']
  #allocation1 [shape = 'u32[144,128]{1,0:T(1,128)}', space=vmem, size = 0x12000, scoped, tag = 'internal scratch']
  %s0 = inlined_call_operand.vmem [shape: bf16[16,64], index: 0, kind: input, shape index: {}]
  %s1 = inlined_call_operand.hbm [shape: bf16[64,128], index: 1, kind: input, shape index: {}]
  %s2 = inlined_call_operand.vmem [shape: f32[1,128], index: 2, kind: input, shape index: {}]
  %s3 = inlined_call_operand.hbm [shape: bf16[128,256], index: 3, kind: input, shape index: {}]
  %s4 = inlined_call_operand.vmem [shape: f32[1,256], index: 4, kind: input, shape index: {}]
  %s5 = inlined_call_operand.hbm [shape: bf16[256,512], index: 5, kind: input, shape index: {}]
  %s6 = inlined_call_operand.hbm [shape: bf16[512,896], index: 6, kind: input, shape index: {}]
  %s7 = inlined_call_operand.vmem [shape: bf16[16,896], index: 7, kind: output, shape index: {}]
  %s8 = sld [smem:[#allocation0]]
  $region54: #{decoder_forward.1} parent=0
    _
  %s10 = ssub.s32 1, %s8
  %s11 = scalar_select 0, %s10, %s8
  $region1: #{decoder_forward.1} parent=0
    #allocation2 [shape = 'u8[16384]{0}', space=vmem, size = 0x4000, scoped, tag = 'input window, operand 1, single buffered']
    #allocation3 [shape = 's32[1]{0}', space=sflag, size = 0x4, scoped, tag = 'scoped memory for decoder_forward.1']
    #allocation4 [shape = 'u8[65536]{0}', space=vmem, size = 0x10000, scoped, tag = 'input window, operand 3, single buffered']
    #allocation5 [shape = 's32[1]{0}', space=sflag, size = 0x4, scoped, tag = 'scoped memory for decoder_forward.1']
    #allocation6 [shape = 'u8[262144]{0}', space=vmem, size = 0x40000, scoped, tag = 'input window, operand 5, single buffered']
    #allocation7 [shape = 'u8[917504]{0}', space=vmem, size = 0xe0000, scoped, tag = 'input window, operand 6, single buffered']
    #allocation8 [shape = 's32[1]{0}', space=sflag, size = 0x4, scoped, tag = 'scoped memory for decoder_forward.1']
    %12 = vsyncpa [#allocation3], 0
    %13 = vsyncpa [#allocation5], 0
    %14 = vsyncpa [#allocation8], 0
    // Predicated region
    $region2: #{decoder_forward.1} parent=1 // pred_check
      _
    $region3: #{decoder_forward.1} parent=1 // pred_check_branch
      %16 = sbr.rel (0) target = $region5
    $region4: #{decoder_forward.1} parent=1 // pred_region
      _
    $region5: #{decoder_forward.1} parent=1 // pred_fallthru
      _
    // Predicated region
    $region6: #{decoder_forward.1} parent=1 // pred_check
      _
    $region7: #{decoder_forward.1} parent=1 // pred_check_branch
      %18 = sbr.rel (0) target = $region9
    $region8: #{decoder_forward.1} parent=1 // pred_region
      %s20 = ssub.s32 512, 512
      %21 = vsyncadd [#allocation3], %s20
      %s22 = sshll.u32 [#allocation2], 4
      %s23 = int_to_ptr.vmem [resolvable:$true] %s22
      %28 = dma.hbm_to_vmem [thread:$0]  %s1, 512, %s23, [#allocation3], 64, 64, 4
    $region9: #{decoder_forward.1} parent=1 // pred_fallthru
      _
    // Predicated region
    $region10: #{decoder_forward.1} parent=1 // pred_check
      _
    $region11: #{decoder_forward.1} parent=1 // pred_check_branch
      %30 = sbr.rel (0) target = $region13
    $region12: #{decoder_forward.1} parent=1 // pred_region
      _
    $region13: #{decoder_forward.1} parent=1 // pred_fallthru
      _
    // Predicated region
    $region14: #{decoder_forward.1} parent=1 // pred_check
      _
    $region15: #{decoder_forward.1} parent=1 // pred_check_branch
      %32 = sbr.rel (0) target = $region17
    $region16: #{decoder_forward.1} parent=1 // pred_region
      %s34 = ssub.s32 2048, 2048
      %35 = vsyncadd [#allocation5], %s34
      %s36 = sshll.u32 [#allocation4], 4
      %s37 = int_to_ptr.vmem [resolvable:$true] %s36
      %42 = dma.hbm_to_vmem [thread:$0]  %s3, 2048, %s37, [#allocation5], 128, 128, 8
    $region17: #{decoder_forward.1} parent=1 // pred_fallthru
      _
    // Predicated region
    $region18: #{decoder_forward.1} parent=1 // pred_check
      _
    $region19: #{decoder_forward.1} parent=1 // pred_check_branch
      %44 = sbr.rel (0) target = $region21
    $region20: #{decoder_forward.1} parent=1 // pred_region
      _
    $region21: #{decoder_forward.1} parent=1 // pred_fallthru
      _
    // Predicated region
    $region22: #{decoder_forward.1} parent=1 // pred_check
      _
    $region23: #{decoder_forward.1} parent=1 // pred_check_branch
      %46 = sbr.rel (0) target = $region25
    $region24: #{decoder_forward.1} parent=1 // pred_region
      %s48 = ssub.s32 8192, 8192
      %49 = vsyncadd [#allocation5], %s48
      %s50 = sshll.u32 [#allocation6], 4
      %s51 = int_to_ptr.vmem [resolvable:$true] %s50
      %56 = dma.hbm_to_vmem [thread:$0]  %s5, 8192, %s51, [#allocation5], 256, 256, 16
    $region25: #{decoder_forward.1} parent=1 // pred_fallthru
      _
    // Predicated region
    $region26: #{decoder_forward.1} parent=1 // pred_check
      _
    $region27: #{decoder_forward.1} parent=1 // pred_check_branch
      %58 = sbr.rel (0) target = $region29
    $region28: #{decoder_forward.1} parent=1 // pred_region
      %s60 = ssub.s32 28672, 28672
      %61 = vsyncadd [#allocation8], %s60
      %s62 = sshll.u32 [#allocation7], 4
      %s63 = int_to_ptr.vmem [resolvable:$true] %s62
      %68 = dma.hbm_to_vmem [thread:$0]  %s6, 28672, %s63, [#allocation8], 448, 448, 28
    $region29: #{decoder_forward.1} parent=1 // pred_fallthru
      _
    // Predicated region
    $region30: #{decoder_forward.1} parent=1 // pred_check
      _
    $region31: #{decoder_forward.1} parent=1 // pred_check_branch
      %70 = sbr.rel (0) target = $region33
    $region32: #{decoder_forward.1} parent=1 // pred_region
      %71 = dma.done [#allocation3], 512
    $region33: #{decoder_forward.1} parent=1 // pred_fallthru
      _
    // Predicated region
    $region34: #{decoder_forward.1} parent=1 // pred_check
      _
    $region35: #{decoder_forward.1} parent=1 // pred_check_branch
      %73 = sbr.rel (0) target = $region37
    $region36: #{decoder_forward.1} parent=1 // pred_region
      %74 = dma.done [#allocation5], 2048
    $region37: #{decoder_forward.1} parent=1 // pred_fallthru
      _
    // Predicated region
    $region38: #{decoder_forward.1} parent=1 // pred_check
      _
    $region39: #{decoder_forward.1} parent=1 // pred_check_branch
      %76 = sbr.rel (0) target = $region41
    $region40: #{decoder_forward.1} parent=1 // pred_region
      %77 = dma.done [#allocation5], 8192
    $region41: #{decoder_forward.1} parent=1 // pred_fallthru
      _
    // Predicated region
    $region42: #{decoder_forward.1} parent=1 // pred_check
      _
    $region43: #{decoder_forward.1} parent=1 // pred_check_branch
      %79 = sbr.rel (0) target = $region45
    $region44: #{decoder_forward.1} parent=1 // pred_region
      %80 = dma.done [#allocation8], 28672
    $region45: #{decoder_forward.1} parent=1 // pred_fallthru
      _
    %v82 = vld [vmem:[%s0] sm:$0xf]
    %v83 = vld [vmem:[%s0 + $0x4] sm:$0xf]
    %v84 = vld [vmem:[#allocation2] sm:$0xf]
    %v85 = vld [vmem:[#allocation2 + $0x4] sm:$0xf]
    %v86 = vld [vmem:[#allocation2 + $0x8] sm:$0xf]
    %v87 = vld [vmem:[#allocation2 + $0xc] sm:$0xf]
    %v88 = vld [vmem:[#allocation2 + $0x10] sm:$0xf]
    %v89 = vld [vmem:[#allocation2 + $0x14] sm:$0xf]
    %v90 = vld [vmem:[#allocation2 + $0x18] sm:$0xf]
    %v91 = vld [vmem:[#allocation2 + $0x1c] sm:$0xf]
    %v92 = vld [vmem:[%s2] sm:$0x1]
    %v94 = vlaneseq
    %v95 = vshrl.u32 %v94, 7
    %v96 = vsub.s32 0, %v95
    %v97 = vrot.slane %v92, %v96
    %v101 = vunpack.c.l.b16 %v82
    %v102 = vunpack.c.l.b16 %v83
    %v103 = vpack.c.b16 %v102, %v101
    %v112 = vunpack.c.l.b16 %v84
    %v113 = vunpack.c.l.b16 %v85
    %v114 = vunpack.c.l.b16 %v86
    %v115 = vunpack.c.l.b16 %v87
    %v116 = vunpack.c.l.b16 %v88
    %v117 = vunpack.c.l.b16 %v89
    %v118 = vunpack.c.l.b16 %v90
    %v119 = vunpack.c.l.b16 %v91
    %v120 = vpack.c.b16 %v113, %v112
    %v121 = vpack.c.b16 %v115, %v114
    %v122 = vpack.c.b16 %v117, %v116
    %v123 = vpack.c.b16 %v119, %v118
    %vm128 = vcmask 523264
    %v130 = vsel %vm128, %v103, 0
    %132 = vmatprep.subr.bf16.mxu0 0
    %133 = vmatpush1.bf16.msra.mxu0 %v120
    %134 = vmatprep.subr.bf16.mxu0 0
    %135 = vmatpush1.bf16.msra.mxu0 %v121
    %136 = vmatprep.subr.bf16.mxu0 0
    %137 = vmatpush1.bf16.msra.mxu0 %v122
    %138 = vmatprep.subr.bf16.mxu0 0
    %139 = vmatpush1.bf16.msra.mxu0 %v123
    %140 = vmatprep.subr.bf16.mxu0 0
    %141 = vmatpush1.bf16.msra.mxu0 0
    %142 = vmatprep.subr.bf16.mxu0 0
    %143 = vmatpush1.bf16.msra.mxu0 0
    %144 = vmatprep.subr.bf16.mxu0 0
    %145 = vmatpush1.bf16.msra.mxu0 0
    %146 = vmatprep.subr.bf16.mxu0 0
    %147 = vmatpush1.bf16.msra.mxu0 0
    %148 = vmatprep.subr.bf16.mxu0 0
    %149 = vmatpush1.bf16.msra.mxu0 0
    %150 = vmatprep.subr.bf16.mxu0 0
    %151 = vmatpush1.bf16.msra.mxu0 0
    %152 = vmatprep.subr.bf16.mxu0 0
    %153 = vmatpush1.bf16.msra.mxu0 0
    %154 = vmatprep.subr.bf16.mxu0 0
    %155 = vmatpush1.bf16.msra.mxu0 0
    %156 = vmatprep.subr.bf16.mxu0 0
    %157 = vmatpush1.bf16.msra.mxu0 0
    %158 = vmatprep.subr.bf16.mxu0 0
    %159 = vmatpush1.bf16.msra.mxu0 0
    %160 = vmatprep.subr.bf16.mxu0 0
    %161 = vmatpush1.bf16.msra.mxu0 0
    %162 = vmatprep.subr.bf16.mxu0 0
    %163 = vmatpush1.bf16.msra.mxu0 0
    %164 = vmatprep.mubr.bf16.mxu0 0
    %165 = vmatmul.mubr.bf16.gmra.mrb[0].mxu0 %v130
    %v166 = vpop.f32.mrb[0].mxu0
    %v167 = vadd.f32 %v97, %v166
    %v168 = vpop.f32.mrb[0].mxu0
    %v169 = vpop.f32.mrb[0].mxu0
    %v170 = vadd.f32 %v97, %v169
    %v171 = vpop.f32.mrb[0].mxu0
    %172 = vdwg.mxu0
    %v173 = vmax.f32 %v167, 0.0
    %v174 = vmax.f32 %v170, 0.0
    %v175 = vpack.c.bf16 %v174, %v173
    %v176 = vld [vmem:[#allocation4] sm:$0xff]
    %v177 = vld [vmem:[#allocation4 + $0x8] sm:$0xff]
    %v178 = vld [vmem:[#allocation4 + $0x10] sm:$0xff]
    %v179 = vld [vmem:[#allocation4 + $0x18] sm:$0xff]
    %v180 = vld [vmem:[#allocation4 + $0x20] sm:$0xff]
    %v181 = vld [vmem:[#allocation4 + $0x28] sm:$0xff]
    %v182 = vld [vmem:[#allocation4 + $0x30] sm:$0xff]
    %v183 = vld [vmem:[#allocation4 + $0x38] sm:$0xff]
    %v184 = vld [vmem:[#allocation4 + $0x40] sm:$0xff]
    %v185 = vld [vmem:[#allocation4 + $0x48] sm:$0xff]
    %v186 = vld [vmem:[#allocation4 + $0x50] sm:$0xff]
    %v187 = vld [vmem:[#allocation4 + $0x58] sm:$0xff]
    %v188 = vld [vmem:[#allocation4 + $0x60] sm:$0xff]
    %v189 = vld [vmem:[#allocation4 + $0x68] sm:$0xff]
    %v190 = vld [vmem:[#allocation4 + $0x70] sm:$0xff]
    %v191 = vld [vmem:[#allocation4 + $0x78] sm:$0xff]
    %v192 = vld [vmem:[%s4] sm:$0x3]
    %v194 = vlaneseq
    %v195 = vshrl.u32 %v194, 7
    %v196 = vsub.s32 0, %v195
    %v197 = vrot.slane %v192, %v196
    %v198 = vlaneseq
    %v199 = vshrl.u32 %v198, 7
    %v200 = vsub.s32 1, %v199
    %v201 = vrot.slane %v192, %v200
    %v220 = vunpack.c.l.b16 %v176
    %v221 = vunpack.c.h.b16 %v176
    %v222 = vunpack.c.l.b16 %v177
    %v223 = vunpack.c.h.b16 %v177
    %v224 = vunpack.c.l.b16 %v178
    %v225 = vunpack.c.h.b16 %v178
    %v226 = vunpack.c.l.b16 %v179
    %v227 = vunpack.c.h.b16 %v179
    %v228 = vunpack.c.l.b16 %v180
    %v229 = vunpack.c.h.b16 %v180
    %v230 = vunpack.c.l.b16 %v181
    %v231 = vunpack.c.h.b16 %v181
    %v232 = vunpack.c.l.b16 %v182
    %v233 = vunpack.c.h.b16 %v182
    %v234 = vunpack.c.l.b16 %v183
    %v235 = vunpack.c.h.b16 %v183
    %v236 = vunpack.c.l.b16 %v184
    %v237 = vunpack.c.h.b16 %v184
    %v238 = vunpack.c.l.b16 %v185
    %v239 = vunpack.c.h.b16 %v185
    %v240 = vunpack.c.l.b16 %v186
    %v241 = vunpack.c.h.b16 %v186
    %v242 = vunpack.c.l.b16 %v187
    %v243 = vunpack.c.h.b16 %v187
    %v244 = vunpack.c.l.b16 %v188
    %v245 = vunpack.c.h.b16 %v188
    %v246 = vunpack.c.l.b16 %v189
    %v247 = vunpack.c.h.b16 %v189
    %v248 = vunpack.c.l.b16 %v190
    %v249 = vunpack.c.h.b16 %v190
    %v250 = vunpack.c.l.b16 %v191
    %v251 = vunpack.c.h.b16 %v191
    %v252 = vpack.c.b16 %v222, %v220
    %v253 = vpack.c.b16 %v223, %v221
    %v254 = vpack.c.b16 %v226, %v224
    %v255 = vpack.c.b16 %v227, %v225
    %v256 = vpack.c.b16 %v230, %v228
    %v257 = vpack.c.b16 %v231, %v229
    %v258 = vpack.c.b16 %v234, %v232
    %v259 = vpack.c.b16 %v235, %v233
    %v260 = vpack.c.b16 %v238, %v236
    %v261 = vpack.c.b16 %v239, %v237
    %v262 = vpack.c.b16 %v242, %v240
    %v263 = vpack.c.b16 %v243, %v241
    %v264 = vpack.c.b16 %v246, %v244
    %v265 = vpack.c.b16 %v247, %v245
    %v266 = vpack.c.b16 %v250, %v248
    %v267 = vpack.c.b16 %v251, %v249
    %284 = vmatprep.subr.bf16.mxu0 %v253
    %285 = vmatpush1.bf16.msra.mxu0 %v252
    %286 = vmatprep.subr.bf16.mxu0 %v255
    %287 = vmatpush1.bf16.msra.mxu0 %v254
    %288 = vmatprep.subr.bf16.mxu0 %v257
    %289 = vmatpush1.bf16.msra.mxu0 %v256
    %290 = vmatprep.subr.bf16.mxu0 %v259
    %291 = vmatpush1.bf16.msra.mxu0 %v258
    %292 = vmatprep.subr.bf16.mxu0 %v261
    %293 = vmatpush1.bf16.msra.mxu0 %v260
    %294 = vmatprep.subr.bf16.mxu0 %v263
    %295 = vmatpush1.bf16.msra.mxu0 %v262
    %296 = vmatprep.subr.bf16.mxu0 %v265
    %297 = vmatpush1.bf16.msra.mxu0 %v264
    %298 = vmatprep.subr.bf16.mxu0 %v267
    %299 = vmatpush1.bf16.msra.mxu0 %v266
    %300 = vmatprep.subr.bf16.mxu0 0
    %301 = vmatpush1.bf16.msra.mxu0 0
    %302 = vmatprep.subr.bf16.mxu0 0
    %303 = vmatpush1.bf16.msra.mxu0 0
    %304 = vmatprep.subr.bf16.mxu0 0
    %305 = vmatpush1.bf16.msra.mxu0 0
    %306 = vmatprep.subr.bf16.mxu0 0
    %307 = vmatpush1.bf16.msra.mxu0 0
    %308 = vmatprep.subr.bf16.mxu0 0
    %309 = vmatpush1.bf16.msra.mxu0 0
    %310 = vmatprep.subr.bf16.mxu0 0
    %311 = vmatpush1.bf16.msra.mxu0 0
    %312 = vmatprep.subr.bf16.mxu0 0
    %313 = vmatpush1.bf16.msra.mxu0 0
    %314 = vmatprep.subr.bf16.mxu0 0
    %315 = vmatpush1.bf16.msra.mxu0 0
    %316 = vmatprep.mubr.bf16.mxu0 0
    %317 = vmatmul.mubr.bf16.gmra.mrb[0].mxu0 %v175
    %v318 = vpop.f32.mrb[0].mxu0
    %v319 = vadd.f32 %v197, %v318
    %v320 = vpop.f32.mrb[0].mxu0
    %v321 = vadd.f32 %v201, %v320
    %v322 = vpop.f32.mrb[0].mxu0
    %v323 = vadd.f32 %v197, %v322
    %v324 = vpop.f32.mrb[0].mxu0
    %v325 = vadd.f32 %v201, %v324
    %326 = vdwg.mxu0
    %v327 = vmax.f32 %v319, 0.0
    %v328 = vmax.f32 %v321, 0.0
    %v329 = vmax.f32 %v323, 0.0
    %v330 = vmax.f32 %v325, 0.0
    %v331 = vpack.c.bf16 %v329, %v327
    %v332 = vpack.c.bf16 %v330, %v328
    %v333 = vld [vmem:[#allocation6] sm:$0xff]
    %v334 = vld [vmem:[#allocation6 + $0x8] sm:$0xff]
    %v335 = vld [vmem:[#allocation6 + $0x10] sm:$0xff]
    %v336 = vld [vmem:[#allocation6 + $0x18] sm:$0xff]
    %v337 = vld [vmem:[#allocation6 + $0x20] sm:$0xff]
    %v338 = vld [vmem:[#allocation6 + $0x28] sm:$0xff]
    %v339 = vld [vmem:[#allocation6 + $0x30] sm:$0xff]
    %v340 = vld [vmem:[#allocation6 + $0x38] sm:$0xff]
    %v341 = vld [vmem:[#allocation6 + $0x40] sm:$0xff]
    %v342 = vld [vmem:[#allocation6 + $0x48] sm:$0xff]
    %v343 = vld [vmem:[#allocation6 + $0x50] sm:$0xff]
    %v344 = vld [vmem:[#allocation6 + $0x58] sm:$0xff]
    %v345 = vld [vmem:[#allocation6 + $0x60] sm:$0xff]
    %v346 = vld [vmem:[#allocation6 + $0x68] sm:$0xff]
    %v347 = vld [vmem:[#allocation6 + $0x70] sm:$0xff]
    %v348 = vld [vmem:[#allocation6 + $0x78] sm:$0xff]
    %v349 = vld [vmem:[#allocation6 + $0x80] sm:$0xff]
    %v350 = vld [vmem:[#allocation6 + $0x88] sm:$0xff]
    %v351 = vld [vmem:[#allocation6 + $0x90] sm:$0xff]
    %v352 = vld [vmem:[#allocation6 + $0x98] sm:$0xff]
    %v353 = vld [vmem:[#allocation6 + $0xa0] sm:$0xff]
    %v354 = vld [vmem:[#allocation6 + $0xa8] sm:$0xff]
    %v355 = vld [vmem:[#allocation6 + $0xb0] sm:$0xff]
    %v356 = vld [vmem:[#allocation6 + $0xb8] sm:$0xff]
    %v357 = vld [vmem:[#allocation6 + $0xc0] sm:$0xff]
    %v358 = vld [vmem:[#allocation6 + $0xc8] sm:$0xff]
    %v359 = vld [vmem:[#allocation6 + $0xd0] sm:$0xff]
    %v360 = vld [vmem:[#allocation6 + $0xd8] sm:$0xff]
    %v361 = vld [vmem:[#allocation6 + $0xe0] sm:$0xff]
    %v362 = vld [vmem:[#allocation6 + $0xe8] sm:$0xff]
    %v363 = vld [vmem:[#allocation6 + $0xf0] sm:$0xff]
    %v364 = vld [vmem:[#allocation6 + $0xf8] sm:$0xff]
    %v365 = vld [vmem:[#allocation6 + $0x100] sm:$0xff]
    %v366 = vld [vmem:[#allocation6 + $0x108] sm:$0xff]
    %v367 = vld [vmem:[#allocation6 + $0x110] sm:$0xff]
    %v368 = vld [vmem:[#allocation6 + $0x118] sm:$0xff]
    %v369 = vld [vmem:[#allocation6 + $0x120] sm:$0xff]
    %v370 = vld [vmem:[#allocation6 + $0x128] sm:$0xff]
    %v371 = vld [vmem:[#allocation6 + $0x130] sm:$0xff]
    %v372 = vld [vmem:[#allocation6 + $0x138] sm:$0xff]
    %v373 = vld [vmem:[#allocation6 + $0x140] sm:$0xff]
    %v374 = vld [vmem:[#allocation6 + $0x148] sm:$0xff]
    %v375 = vld [vmem:[#allocation6 + $0x150] sm:$0xff]
    %v376 = vld [vmem:[#allocation6 + $0x158] sm:$0xff]
    %v377 = vld [vmem:[#allocation6 + $0x160] sm:$0xff]
    %v378 = vld [vmem:[#allocation6 + $0x168] sm:$0xff]
    %v379 = vld [vmem:[#allocation6 + $0x170] sm:$0xff]
    %v380 = vld [vmem:[#allocation6 + $0x178] sm:$0xff]
    %v381 = vld [vmem:[#allocation6 + $0x180] sm:$0xff]
    %v382 = vld [vmem:[#allocation6 + $0x188] sm:$0xff]
    %v383 = vld [vmem:[#allocation6 + $0x190] sm:$0xff]
    %v384 = vld [vmem:[#allocation6 + $0x198] sm:$0xff]
    %v385 = vld [vmem:[#allocation6 + $0x1a0] sm:$0xff]
    %v386 = vld [vmem:[#allocation6 + $0x1a8] sm:$0xff]
    %v387 = vld [vmem:[#allocation6 + $0x1b0] sm:$0xff]
    %v388 = vld [vmem:[#allocation6 + $0x1b8] sm:$0xff]
    %v389 = vld [vmem:[#allocation6 + $0x1c0] sm:$0xff]
    %v390 = vld [vmem:[#allocation6 + $0x1c8] sm:$0xff]
    %v391 = vld [vmem:[#allocation6 + $0x1d0] sm:$0xff]
    %v392 = vld [vmem:[#allocation6 + $0x1d8] sm:$0xff]
    %v393 = vld [vmem:[#allocation6 + $0x1e0] sm:$0xff]
    %v394 = vld [vmem:[#allocation6 + $0x1e8] sm:$0xff]
    %v395 = vld [vmem:[#allocation6 + $0x1f0] sm:$0xff]
    %v396 = vld [vmem:[#allocation6 + $0x1f8] sm:$0xff]
    %v461 = vunpack.c.l.b16 %v333
    %v462 = vunpack.c.h.b16 %v333
    %v463 = vunpack.c.l.b16 %v334
    %v464 = vunpack.c.h.b16 %v334
    %v465 = vunpack.c.l.b16 %v335
    %v466 = vunpack.c.h.b16 %v335
    %v467 = vunpack.c.l.b16 %v336
    %v468 = vunpack.c.h.b16 %v336
    %v469 = vunpack.c.l.b16 %v337
    %v470 = vunpack.c.h.b16 %v337
    %v471 = vunpack.c.l.b16 %v338
    %v472 = vunpack.c.h.b16 %v338
    %v473 = vunpack.c.l.b16 %v339
    %v474 = vunpack.c.h.b16 %v339
    %v475 = vunpack.c.l.b16 %v340
    %v476 = vunpack.c.h.b16 %v340
    %v477 = vunpack.c.l.b16 %v341
    %v478 = vunpack.c.h.b16 %v341
    %v479 = vunpack.c.l.b16 %v342
    %v480 = vunpack.c.h.b16 %v342
    %v481 = vunpack.c.l.b16 %v343
    %v482 = vunpack.c.h.b16 %v343
    %v483 = vunpack.c.l.b16 %v344
    %v484 = vunpack.c.h.b16 %v344
    %v485 = vunpack.c.l.b16 %v345
    %v486 = vunpack.c.h.b16 %v345
    %v487 = vunpack.c.l.b16 %v346
    %v488 = vunpack.c.h.b16 %v346
    %v489 = vunpack.c.l.b16 %v347
    %v490 = vunpack.c.h.b16 %v347
    %v491 = vunpack.c.l.b16 %v348
    %v492 = vunpack.c.h.b16 %v348
    %v493 = vunpack.c.l.b16 %v349
    %v494 = vunpack.c.h.b16 %v349
    %v495 = vunpack.c.l.b16 %v350
    %v496 = vunpack.c.h.b16 %v350
    %v497 = vunpack.c.l.b16 %v351
    %v498 = vunpack.c.h.b16 %v351
    %v499 = vunpack.c.l.b16 %v352
    %v500 = vunpack.c.h.b16 %v352
    %v501 = vunpack.c.l.b16 %v353
    %v502 = vunpack.c.h.b16 %v353
    %v503 = vunpack.c.l.b16 %v354
    %v504 = vunpack.c.h.b16 %v354
    %v505 = vunpack.c.l.b16 %v355
    %v506 = vunpack.c.h.b16 %v355
    %v507 = vunpack.c.l.b16 %v356
    %v508 = vunpack.c.h.b16 %v356
    %v509 = vunpack.c.l.b16 %v357
    %v510 = vunpack.c.h.b16 %v357
    %v511 = vunpack.c.l.b16 %v358
    %v512 = vunpack.c.h.b16 %v358
    %v513 = vunpack.c.l.b16 %v359
    %v514 = vunpack.c.h.b16 %v359
    %v515 = vunpack.c.l.b16 %v360
    %v516 = vunpack.c.h.b16 %v360
    %v517 = vunpack.c.l.b16 %v361
    %v518 = vunpack.c.h.b16 %v361
    %v519 = vunpack.c.l.b16 %v362
    %v520 = vunpack.c.h.b16 %v362
    %v521 = vunpack.c.l.b16 %v363
    %v522 = vunpack.c.h.b16 %v363
    %v523 = vunpack.c.l.b16 %v364
    %v524 = vunpack.c.h.b16 %v364
    %v525 = vunpack.c.l.b16 %v365
    %v526 = vunpack.c.h.b16 %v365
    %v527 = vunpack.c.l.b16 %v366
    %v528 = vunpack.c.h.b16 %v366
    %v529 = vunpack.c.l.b16 %v367
    %v530 = vunpack.c.h.b16 %v367
    %v531 = vunpack.c.l.b16 %v368
    %v532 = vunpack.c.h.b16 %v368
    %v533 = vunpack.c.l.b16 %v369
    %v534 = vunpack.c.h.b16 %v369
    %v535 = vunpack.c.l.b16 %v370
    %v536 = vunpack.c.h.b16 %v370
    %v537 = vunpack.c.l.b16 %v371
    %v538 = vunpack.c.h.b16 %v371
    %v539 = vunpack.c.l.b16 %v372
    %v540 = vunpack.c.h.b16 %v372
    %v541 = vunpack.c.l.b16 %v373
    %v542 = vunpack.c.h.b16 %v373
    %v543 = vunpack.c.l.b16 %v374
    %v544 = vunpack.c.h.b16 %v374
    %v545 = vunpack.c.l.b16 %v375
    %v546 = vunpack.c.h.b16 %v375
    %v547 = vunpack.c.l.b16 %v376
    %v548 = vunpack.c.h.b16 %v376
    %v549 = vunpack.c.l.b16 %v377
    %v550 = vunpack.c.h.b16 %v377
    %v551 = vunpack.c.l.b16 %v378
    %v552 = vunpack.c.h.b16 %v378
    %v553 = vunpack.c.l.b16 %v379
    %v554 = vunpack.c.h.b16 %v379
    %v555 = vunpack.c.l.b16 %v380
    %v556 = vunpack.c.h.b16 %v380
    %v557 = vunpack.c.l.b16 %v381
    %v558 = vunpack.c.h.b16 %v381
    %v559 = vunpack.c.l.b16 %v382
    %v560 = vunpack.c.h.b16 %v382
    %v561 = vunpack.c.l.b16 %v383
    %v562 = vunpack.c.h.b16 %v383
    %v563 = vunpack.c.l.b16 %v384
    %v564 = vunpack.c.h.b16 %v384
    %v565 = vunpack.c.l.b16 %v385
    %v566 = vunpack.c.h.b16 %v385
    %v567 = vunpack.c.l.b16 %v386
    %v568 = vunpack.c.h.b16 %v386
    %v569 = vunpack.c.l.b16 %v387
    %v570 = vunpack.c.h.b16 %v387
    %v571 = vunpack.c.l.b16 %v388
    %v572 = vunpack.c.h.b16 %v388
    %v573 = vunpack.c.l.b16 %v389
    %v574 = vunpack.c.h.b16 %v389
    %v575 = vunpack.c.l.b16 %v390
    %v576 = vunpack.c.h.b16 %v390
    %v577 = vunpack.c.l.b16 %v391
    %v578 = vunpack.c.h.b16 %v391
    %v579 = vunpack.c.l.b16 %v392
    %v580 = vunpack.c.h.b16 %v392
    %v581 = vunpack.c.l.b16 %v393
    %v582 = vunpack.c.h.b16 %v393
    %v583 = vunpack.c.l.b16 %v394
    %v584 = vunpack.c.h.b16 %v394
    %v585 = vunpack.c.l.b16 %v395
    %v586 = vunpack.c.h.b16 %v395
    %v587 = vunpack.c.l.b16 %v396
    %v588 = vunpack.c.h.b16 %v396
    %v589 = vpack.c.b16 %v465, %v461
    %v590 = vpack.c.b16 %v466, %v462
    %v591 = vpack.c.b16 %v467, %v463
    %v592 = vpack.c.b16 %v468, %v464
    %v593 = vpack.c.b16 %v473, %v469
    %v594 = vpack.c.b16 %v474, %v470
    %v595 = vpack.c.b16 %v475, %v471
    %v596 = vpack.c.b16 %v476, %v472
    %v597 = vpack.c.b16 %v481, %v477
    %v598 = vpack.c.b16 %v482, %v478
    %v599 = vpack.c.b16 %v483, %v479
    %v600 = vpack.c.b16 %v484, %v480
    %v601 = vpack.c.b16 %v489, %v485
    %v602 = vpack.c.b16 %v490, %v486
    %v603 = vpack.c.b16 %v491, %v487
    %v604 = vpack.c.b16 %v492, %v488
    %v605 = vpack.c.b16 %v497, %v493
    %v606 = vpack.c.b16 %v498, %v494
    %v607 = vpack.c.b16 %v499, %v495
    %v608 = vpack.c.b16 %v500, %v496
    %v609 = vpack.c.b16 %v505, %v501
    %v610 = vpack.c.b16 %v506, %v502
    %v611 = vpack.c.b16 %v507, %v503
    %v612 = vpack.c.b16 %v508, %v504
    %v613 = vpack.c.b16 %v513, %v509
    %v614 = vpack.c.b16 %v514, %v510
    %v615 = vpack.c.b16 %v515, %v511
    %v616 = vpack.c.b16 %v516, %v512
    %v617 = vpack.c.b16 %v521, %v517
    %v618 = vpack.c.b16 %v522, %v518
    %v619 = vpack.c.b16 %v523, %v519
    %v620 = vpack.c.b16 %v524, %v520
    %v621 = vpack.c.b16 %v529, %v525
    %v622 = vpack.c.b16 %v530, %v526
    %v623 = vpack.c.b16 %v531, %v527
    %v624 = vpack.c.b16 %v532, %v528
    %v625 = vpack.c.b16 %v537, %v533
    %v626 = vpack.c.b16 %v538, %v534
    %v627 = vpack.c.b16 %v539, %v535
    %v628 = vpack.c.b16 %v540, %v536
    %v629 = vpack.c.b16 %v545, %v541
    %v630 = vpack.c.b16 %v546, %v542
    %v631 = vpack.c.b16 %v547, %v543
    %v632 = vpack.c.b16 %v548, %v544
    %v633 = vpack.c.b16 %v553, %v549
    %v634 = vpack.c.b16 %v554, %v550
    %v635 = vpack.c.b16 %v555, %v551
    %v636 = vpack.c.b16 %v556, %v552
    %v637 = vpack.c.b16 %v561, %v557
    %v638 = vpack.c.b16 %v562, %v558
    %v639 = vpack.c.b16 %v563, %v559
    %v640 = vpack.c.b16 %v564, %v560
    %v641 = vpack.c.b16 %v569, %v565
    %v642 = vpack.c.b16 %v570, %v566
    %v643 = vpack.c.b16 %v571, %v567
    %v644 = vpack.c.b16 %v572, %v568
    %v645 = vpack.c.b16 %v577, %v573
    %v646 = vpack.c.b16 %v578, %v574
    %v647 = vpack.c.b16 %v579, %v575
    %v648 = vpack.c.b16 %v580, %v576
    %v649 = vpack.c.b16 %v585, %v581
    %v650 = vpack.c.b16 %v586, %v582
    %v651 = vpack.c.b16 %v587, %v583
    %v652 = vpack.c.b16 %v588, %v584
    %717 = vmatprep.subr.bf16.mxu0 %v590
    %718 = vmatpush1.bf16.msra.mxu0 %v589
    %719 = vmatprep.subr.bf16.mxu0 %v594
    %720 = vmatpush1.bf16.msra.mxu0 %v593
    %721 = vmatprep.subr.bf16.mxu0 %v598
    %722 = vmatpush1.bf16.msra.mxu0 %v597
    %723 = vmatprep.subr.bf16.mxu0 %v602
    %724 = vmatpush1.bf16.msra.mxu0 %v601
    %725 = vmatprep.subr.bf16.mxu0 %v606
    %726 = vmatpush1.bf16.msra.mxu0 %v605
    %727 = vmatprep.subr.bf16.mxu0 %v610
    %728 = vmatpush1.bf16.msra.mxu0 %v609
    %729 = vmatprep.subr.bf16.mxu0 %v614
    %730 = vmatpush1.bf16.msra.mxu0 %v613
    %731 = vmatprep.subr.bf16.mxu0 %v618
    %732 = vmatpush1.bf16.msra.mxu0 %v617
    %733 = vmatprep.subr.bf16.mxu0 %v622
    %734 = vmatpush1.bf16.msra.mxu0 %v621
    %735 = vmatprep.subr.bf16.mxu0 %v626
    %736 = vmatpush1.bf16.msra.mxu0 %v625
    %737 = vmatprep.subr.bf16.mxu0 %v630
    %738 = vmatpush1.bf16.msra.mxu0 %v629
    %739 = vmatprep.subr.bf16.mxu0 %v634
    %740 = vmatpush1.bf16.msra.mxu0 %v633
    %741 = vmatprep.subr.bf16.mxu0 %v638
    %742 = vmatpush1.bf16.msra.mxu0 %v637
    %743 = vmatprep.subr.bf16.mxu0 %v642
    %744 = vmatpush1.bf16.msra.mxu0 %v641
    %745 = vmatprep.subr.bf16.mxu0 %v646
    %746 = vmatpush1.bf16.msra.mxu0 %v645
    %747 = vmatprep.subr.bf16.mxu0 %v650
    %748 = vmatpush1.bf16.msra.mxu0 %v649
    %749 = vmatprep.mubr.bf16.mxu0 %v332
    %750 = vmatmul.mubr.bf16.gmra.mrb[0].mxu0 %v331
    %v751 = vpop.f32.mrb[0].mxu0
    %v752 = vadd.f32 0.0, %v751
    %v753 = vpop.f32.mrb[0].mxu0
    %v754 = vadd.f32 0.0, %v753
    %v755 = vpop.f32.mrb[0].mxu0
    %v756 = vadd.f32 0.0, %v755
    %v757 = vpop.f32.mrb[0].mxu0
    %v758 = vadd.f32 0.0, %v757
    %759 = vdwg.mxu0
    %760 = vmatprep.subr.bf16.mxu0 %v592
    %761 = vmatpush1.bf16.msra.mxu0 %v591
    %762 = vmatprep.subr.bf16.mxu0 %v596
    %763 = vmatpush1.bf16.msra.mxu0 %v595
    %764 = vmatprep.subr.bf16.mxu0 %v600
    %765 = vmatpush1.bf16.msra.mxu0 %v599
    %766 = vmatprep.subr.bf16.mxu0 %v604
    %767 = vmatpush1.bf16.msra.mxu0 %v603
    %768 = vmatprep.subr.bf16.mxu0 %v608
    %769 = vmatpush1.bf16.msra.mxu0 %v607
    %770 = vmatprep.subr.bf16.mxu0 %v612
    %771 = vmatpush1.bf16.msra.mxu0 %v611
    %772 = vmatprep.subr.bf16.mxu0 %v616
    %773 = vmatpush1.bf16.msra.mxu0 %v615
    %774 = vmatprep.subr.bf16.mxu0 %v620
    %775 = vmatpush1.bf16.msra.mxu0 %v619
    %776 = vmatprep.subr.bf16.mxu0 %v624
    %777 = vmatpush1.bf16.msra.mxu0 %v623
    %778 = vmatprep.subr.bf16.mxu0 %v628
    %779 = vmatpush1.bf16.msra.mxu0 %v627
    %780 = vmatprep.subr.bf16.mxu0 %v632
    %781 = vmatpush1.bf16.msra.mxu0 %v631
    %782 = vmatprep.subr.bf16.mxu0 %v636
    %783 = vmatpush1.bf16.msra.mxu0 %v635
    %784 = vmatprep.subr.bf16.mxu0 %v640
    %785 = vmatpush1.bf16.msra.mxu0 %v639
    %786 = vmatprep.subr.bf16.mxu0 %v644
    %787 = vmatpush1.bf16.msra.mxu0 %v643
    %788 = vmatprep.subr.bf16.mxu0 %v648
    %789 = vmatpush1.bf16.msra.mxu0 %v647
    %790 = vmatprep.subr.bf16.mxu0 %v652
    %791 = vmatpush1.bf16.msra.mxu0 %v651
    %792 = vmatprep.mubr.bf16.mxu0 %v332
    %793 = vmatmul.mubr.bf16.gmra.mrb[0].mxu0 %v331
    %v794 = vpop.f32.mrb[0].mxu0
    %v795 = vadd.f32 0.0, %v794
    %v796 = vpop.f32.mrb[0].mxu0
    %v797 = vadd.f32 0.0, %v796
    %v798 = vpop.f32.mrb[0].mxu0
    %v799 = vadd.f32 0.0, %v798
    %v800 = vpop.f32.mrb[0].mxu0
    %v801 = vadd.f32 0.0, %v800
    %802 = vdwg.mxu0
    %v803 = vmax.f32 %v752, 0.0
    %v804 = vmax.f32 %v754, 0.0
    %v805 = vmax.f32 %v795, 0.0
    %v806 = vmax.f32 %v797, 0.0
    %v807 = vmax.f32 %v756, 0.0
    %v808 = vmax.f32 %v758, 0.0
    %v809 = vmax.f32 %v799, 0.0
    %v810 = vmax.f32 %v801, 0.0
    %v811 = vpack.c.bf16 %v807, %v803
    %v812 = vpack.c.bf16 %v808, %v804
    %v813 = vpack.c.bf16 %v809, %v805
    %v814 = vpack.c.bf16 %v810, %v806
    %v815 = vld [vmem:[#allocation7] sm:$0xff]
    %v816 = vld [vmem:[#allocation7 + $0x8] sm:$0xff]
    %v817 = vld [vmem:[#allocation7 + $0x10] sm:$0xff]
    %v818 = vld [vmem:[#allocation7 + $0x18] sm:$0xf]
    %v819 = vld [vmem:[#allocation7 + $0x1c] sm:$0xff]
    %v820 = vld [vmem:[#allocation7 + $0x24] sm:$0xff]
    %v821 = vld [vmem:[#allocation7 + $0x2c] sm:$0xff]
    %v822 = vld [vmem:[#allocation7 + $0x34] sm:$0xf]
    %v823 = vld [vmem:[#allocation7 + $0x38] sm:$0xff]
    %v824 = vld [vmem:[#allocation7 + $0x40] sm:$0xff]
    %v825 = vld [vmem:[#allocation7 + $0x48] sm:$0xff]
    %v826 = vld [vmem:[#allocation7 + $0x50] sm:$0xf]
    %v827 = vld [vmem:[#allocation7 + $0x54] sm:$0xff]
    %v828 = vld [vmem:[#allocation7 + $0x5c] sm:$0xff]
    %v829 = vld [vmem:[#allocation7 + $0x64] sm:$0xff]
    %v830 = vld [vmem:[#allocation7 + $0x6c] sm:$0xf]
    %v831 = vld [vmem:[#allocation7 + $0x70] sm:$0xff]
    %v832 = vld [vmem:[#allocation7 + $0x78] sm:$0xff]
    %v833 = vld [vmem:[#allocation7 + $0x80] sm:$0xff]
    %v834 = vld [vmem:[#allocation7 + $0x88] sm:$0xf]
    %v835 = vld [vmem:[#allocation7 + $0x8c] sm:$0xff]
    %v836 = vld [vmem:[#allocation7 + $0x94] sm:$0xff]
    %v837 = vld [vmem:[#allocation7 + $0x9c] sm:$0xff]
    %v838 = vld [vmem:[#allocation7 + $0xa4] sm:$0xf]
    %v839 = vld [vmem:[#allocation7 + $0xa8] sm:$0xff]
    %v840 = vld [vmem:[#allocation7 + $0xb0] sm:$0xff]
    %v841 = vld [vmem:[#allocation7 + $0xb8] sm:$0xff]
    %v842 = vld [vmem:[#allocation7 + $0xc0] sm:$0xf]
    %v843 = vld [vmem:[#allocation7 + $0xc4] sm:$0xff]
    %v844 = vld [vmem:[#allocation7 + $0xcc] sm:$0xff]
    %v845 = vld [vmem:[#allocation7 + $0xd4] sm:$0xff]
    %v846 = vld [vmem:[#allocation7 + $0xdc] sm:$0xf]
    %v847 = vld [vmem:[#allocation7 + $0xe0] sm:$0xff]
    %v848 = vld [vmem:[#allocation7 + $0xe8] sm:$0xff]
    %v849 = vld [vmem:[#allocation7 + $0xf0] sm:$0xff]
    %v850 = vld [vmem:[#allocation7 + $0xf8] sm:$0xf]
    %v851 = vld [vmem:[#allocation7 + $0xfc] sm:$0xff]
    %v852 = vld [vmem:[#allocation7 + $0x104] sm:$0xff]
    %v853 = vld [vmem:[#allocation7 + $0x10c] sm:$0xff]
    %v854 = vld [vmem:[#allocation7 + $0x114] sm:$0xf]
    %v855 = vld [vmem:[#allocation7 + $0x118] sm:$0xff]
    %v856 = vld [vmem:[#allocation7 + $0x120] sm:$0xff]
    %v857 = vld [vmem:[#allocation7 + $0x128] sm:$0xff]
    %v858 = vld [vmem:[#allocation7 + $0x130] sm:$0xf]
    %v859 = vld [vmem:[#allocation7 + $0x134] sm:$0xff]
    %v860 = vld [vmem:[#allocation7 + $0x13c] sm:$0xff]
    %v861 = vld [vmem:[#allocation7 + $0x144] sm:$0xff]
    %v862 = vld [vmem:[#allocation7 + $0x14c] sm:$0xf]
    %v863 = vld [vmem:[#allocation7 + $0x150] sm:$0xff]
    %v864 = vld [vmem:[#allocation7 + $0x158] sm:$0xff]
    %v865 = vld [vmem:[#allocation7 + $0x160] sm:$0xff]
    %v866 = vld [vmem:[#allocation7 + $0x168] sm:$0xf]
    %v867 = vld [vmem:[#allocation7 + $0x16c] sm:$0xff]
    %v868 = vld [vmem:[#allocation7 + $0x174] sm:$0xff]
    %v869 = vld [vmem:[#allocation7 + $0x17c] sm:$0xff]
    %v870 = vld [vmem:[#allocation7 + $0x184] sm:$0xf]
    %v871 = vld [vmem:[#allocation7 + $0x188] sm:$0xff]
    %v872 = vld [vmem:[#allocation7 + $0x190] sm:$0xff]
    %v873 = vld [vmem:[#allocation7 + $0x198] sm:$0xff]
    %v874 = vld [vmem:[#allocation7 + $0x1a0] sm:$0xf]
    %v875 = vld [vmem:[#allocation7 + $0x1a4] sm:$0xff]
    %v876 = vld [vmem:[#allocation7 + $0x1ac] sm:$0xff]
    %v877 = vld [vmem:[#allocation7 + $0x1b4] sm:$0xff]
    %v878 = vld [vmem:[#allocation7 + $0x1bc] sm:$0xf]
    %v879 = vld [vmem:[#allocation7 + $0x1c0] sm:$0xff]
    %v880 = vld [vmem:[#allocation7 + $0x1c8] sm:$0xff]
    %v881 = vld [vmem:[#allocation7 + $0x1d0] sm:$0xff]
    %v882 = vld [vmem:[#allocation7 + $0x1d8] sm:$0xf]
    %v883 = vld [vmem:[#allocation7 + $0x1dc] sm:$0xff]
    %v884 = vld [vmem:[#allocation7 + $0x1e4] sm:$0xff]
    %v885 = vld [vmem:[#allocation7 + $0x1ec] sm:$0xff]
    %v886 = vld [vmem:[#allocation7 + $0x1f4] sm:$0xf]
    %v887 = vld [vmem:[#allocation7 + $0x1f8] sm:$0xff]
    %v888 = vld [vmem:[#allocation7 + $0x200] sm:$0xff]
    %v889 = vld [vmem:[#allocation7 + $0x208] sm:$0xff]
    %v890 = vld [vmem:[#allocation7 + $0x210] sm:$0xf]
    %v891 = vld [vmem:[#allocation7 + $0x214] sm:$0xff]
    %v892 = vld [vmem:[#allocation7 + $0x21c] sm:$0xff]
    %v893 = vld [vmem:[#allocation7 + $0x224] sm:$0xff]
    %v894 = vld [vmem:[#allocation7 + $0x22c] sm:$0xf]
    %v895 = vld [vmem:[#allocation7 + $0x230] sm:$0xff]
    %v896 = vld [vmem:[#allocation7 + $0x238] sm:$0xff]
    %v897 = vld [vmem:[#allocation7 + $0x240] sm:$0xff]
    %v898 = vld [vmem:[#allocation7 + $0x248] sm:$0xf]
    %v899 = vld [vmem:[#allocation7 + $0x24c] sm:$0xff]
    %v900 = vld [vmem:[#allocation7 + $0x254] sm:$0xff]
    %v901 = vld [vmem:[#allocation7 + $0x25c] sm:$0xff]
    %v902 = vld [vmem:[#allocation7 + $0x264] sm:$0xf]
    %v903 = vld [vmem:[#allocation7 + $0x268] sm:$0xff]
    %v904 = vld [vmem:[#allocation7 + $0x270] sm:$0xff]
    %v905 = vld [vmem:[#allocation7 + $0x278] sm:$0xff]
    %v906 = vld [vmem:[#allocation7 + $0x280] sm:$0xf]
    %v907 = vld [vmem:[#allocation7 + $0x284] sm:$0xff]
    %v908 = vld [vmem:[#allocation7 + $0x28c] sm:$0xff]
    %v909 = vld [vmem:[#allocation7 + $0x294] sm:$0xff]
    %v910 = vld [vmem:[#allocation7 + $0x29c] sm:$0xf]
    %v911 = vld [vmem:[#allocation7 + $0x2a0] sm:$0xff]
    %v912 = vld [vmem:[#allocation7 + $0x2a8] sm:$0xff]
    %v913 = vld [vmem:[#allocation7 + $0x2b0] sm:$0xff]
    %v914 = vld [vmem:[#allocation7 + $0x2b8] sm:$0xf]
    %v915 = vld [vmem:[#allocation7 + $0x2bc] sm:$0xff]
    %v916 = vld [vmem:[#allocation7 + $0x2c4] sm:$0xff]
    %v917 = vld [vmem:[#allocation7 + $0x2cc] sm:$0xff]
    %v918 = vld [vmem:[#allocation7 + $0x2d4] sm:$0xf]
    %v919 = vld [vmem:[#allocation7 + $0x2d8] sm:$0xff]
    %v920 = vld [vmem:[#allocation7 + $0x2e0] sm:$0xff]
    %v921 = vld [vmem:[#allocation7 + $0x2e8] sm:$0xff]
    %v922 = vld [vmem:[#allocation7 + $0x2f0] sm:$0xf]
    %v923 = vld [vmem:[#allocation7 + $0x2f4] sm:$0xff]
    %v924 = vld [vmem:[#allocation7 + $0x2fc] sm:$0xff]
    %v925 = vld [vmem:[#allocation7 + $0x304] sm:$0xff]
    %v926 = vld [vmem:[#allocation7 + $0x30c] sm:$0xf]
    %v927 = vld [vmem:[#allocation7 + $0x310] sm:$0xff]
    %v928 = vld [vmem:[#allocation7 + $0x318] sm:$0xff]
    %v929 = vld [vmem:[#allocation7 + $0x320] sm:$0xff]
    %v930 = vld [vmem:[#allocation7 + $0x328] sm:$0xf]
    %v931 = vld [vmem:[#allocation7 + $0x32c] sm:$0xff]
    %v932 = vld [vmem:[#allocation7 + $0x334] sm:$0xff]
    %v933 = vld [vmem:[#allocation7 + $0x33c] sm:$0xff]
    %v934 = vld [vmem:[#allocation7 + $0x344] sm:$0xf]
    %v935 = vld [vmem:[#allocation7 + $0x348] sm:$0xff]
    %v936 = vld [vmem:[#allocation7 + $0x350] sm:$0xff]
    %v937 = vld [vmem:[#allocation7 + $0x358] sm:$0xff]
    %v938 = vld [vmem:[#allocation7 + $0x360] sm:$0xf]
    %v939 = vld [vmem:[#allocation7 + $0x364] sm:$0xff]
    %v940 = vld [vmem:[#allocation7 + $0x36c] sm:$0xff]
    %v941 = vld [vmem:[#allocation7 + $0x374] sm:$0xff]
    %v942 = vld [vmem:[#allocation7 + $0x37c] sm:$0xf]
    %v943 = vld [vmem:[#allocation7 + $0x380] sm:$0xff]
    %v944 = vld [vmem:[#allocation7 + $0x388] sm:$0xff]
    %v945 = vld [vmem:[#allocation7 + $0x390] sm:$0xff]
    %v946 = vld [vmem:[#allocation7 + $0x398] sm:$0xf]
    %v947 = vld [vmem:[#allocation7 + $0x39c] sm:$0xff]
    %v948 = vld [vmem:[#allocation7 + $0x3a4] sm:$0xff]
    %v949 = vld [vmem:[#allocation7 + $0x3ac] sm:$0xff]
    %v950 = vld [vmem:[#allocation7 + $0x3b4] sm:$0xf]
    %v951 = vld [vmem:[#allocation7 + $0x3b8] sm:$0xff]
    %v952 = vld [vmem:[#allocation7 + $0x3c0] sm:$0xff]
    %v953 = vld [vmem:[#allocation7 + $0x3c8] sm:$0xff]
    %v954 = vld [vmem:[#allocation7 + $0x3d0] sm:$0xf]
    %v955 = vld [vmem:[#allocation7 + $0x3d4] sm:$0xff]
    %v956 = vld [vmem:[#allocation7 + $0x3dc] sm:$0xff]
    %v957 = vld [vmem:[#allocation7 + $0x3e4] sm:$0xff]
    %v958 = vld [vmem:[#allocation7 + $0x3ec] sm:$0xf]
    %v959 = vld [vmem:[#allocation7 + $0x3f0] sm:$0xff]
    %v960 = vld [vmem:[#allocation7 + $0x3f8] sm:$0xff]
    %v961 = vld [vmem:[#allocation7 + $0x400] sm:$0xff]
    %v962 = vld [vmem:[#allocation7 + $0x408] sm:$0xf]
    %v963 = vld [vmem:[#allocation7 + $0x40c] sm:$0xff]
    %v964 = vld [vmem:[#allocation7 + $0x414] sm:$0xff]
    %v965 = vld [vmem:[#allocation7 + $0x41c] sm:$0xff]
    %v966 = vld [vmem:[#allocation7 + $0x424] sm:$0xf]
    %v967 = vld [vmem:[#allocation7 + $0x428] sm:$0xff]
    %v968 = vld [vmem:[#allocation7 + $0x430] sm:$0xff]
    %v969 = vld [vmem:[#allocation7 + $0x438] sm:$0xff]
    %v970 = vld [vmem:[#allocation7 + $0x440] sm:$0xf]
    %v971 = vld [vmem:[#allocation7 + $0x444] sm:$0xff]
    %v972 = vld [vmem:[#allocation7 + $0x44c] sm:$0xff]
    %v973 = vld [vmem:[#allocation7 + $0x454] sm:$0xff]
    %v974 = vld [vmem:[#allocation7 + $0x45c] sm:$0xf]
    %v975 = vld [vmem:[#allocation7 + $0x460] sm:$0xff]
    %v976 = vld [vmem:[#allocation7 + $0x468] sm:$0xff]
    %v977 = vld [vmem:[#allocation7 + $0x470] sm:$0xff]
    %v978 = vld [vmem:[#allocation7 + $0x478] sm:$0xf]
    %v979 = vld [vmem:[#allocation7 + $0x47c] sm:$0xff]
    %v980 = vld [vmem:[#allocation7 + $0x484] sm:$0xff]
    %v981 = vld [vmem:[#allocation7 + $0x48c] sm:$0xff]
    %v982 = vld [vmem:[#allocation7 + $0x494] sm:$0xf]
    %v983 = vld [vmem:[#allocation7 + $0x498] sm:$0xff]
    %v984 = vld [vmem:[#allocation7 + $0x4a0] sm:$0xff]
    %v985 = vld [vmem:[#allocation7 + $0x4a8] sm:$0xff]
    %v986 = vld [vmem:[#allocation7 + $0x4b0] sm:$0xf]
    %v987 = vld [vmem:[#allocation7 + $0x4b4] sm:$0xff]
    %v988 = vld [vmem:[#allocation7 + $0x4bc] sm:$0xff]
    %v989 = vld [vmem:[#allocation7 + $0x4c4] sm:$0xff]
    %v990 = vld [vmem:[#allocation7 + $0x4cc] sm:$0xf]
    %v991 = vld [vmem:[#allocation7 + $0x4d0] sm:$0xff]
    %v992 = vld [vmem:[#allocation7 + $0x4d8] sm:$0xff]
    %v993 = vld [vmem:[#allocation7 + $0x4e0] sm:$0xff]
    %v994 = vld [vmem:[#allocation7 + $0x4e8] sm:$0xf]
    %v995 = vld [vmem:[#allocation7 + $0x4ec] sm:$0xff]
    %v996 = vld [vmem:[#allocation7 + $0x4f4] sm:$0xff]
    %v997 = vld [vmem:[#allocation7 + $0x4fc] sm:$0xff]
    %v998 = vld [vmem:[#allocation7 + $0x504] sm:$0xf]
    %v999 = vld [vmem:[#allocation7 + $0x508] sm:$0xff]
    %v1000 = vld [vmem:[#allocation7 + $0x510] sm:$0xff]
    %v1001 = vld [vmem:[#allocation7 + $0x518] sm:$0xff]
    %v1002 = vld [vmem:[#allocation7 + $0x520] sm:$0xf]
    %v1003 = vld [vmem:[#allocation7 + $0x524] sm:$0xff]
    %v1004 = vld [vmem:[#allocation7 + $0x52c] sm:$0xff]
    %v1005 = vld [vmem:[#allocation7 + $0x534] sm:$0xff]
    %v1006 = vld [vmem:[#allocation7 + $0x53c] sm:$0xf]
    %v1007 = vld [vmem:[#allocation7 + $0x540] sm:$0xff]
    %v1008 = vld [vmem:[#allocation7 + $0x548] sm:$0xff]
    %v1009 = vld [vmem:[#allocation7 + $0x550] sm:$0xff]
    %v1010 = vld [vmem:[#allocation7 + $0x558] sm:$0xf]
    %v1011 = vld [vmem:[#allocation7 + $0x55c] sm:$0xff]
    %v1012 = vld [vmem:[#allocation7 + $0x564] sm:$0xff]
    %v1013 = vld [vmem:[#allocation7 + $0x56c] sm:$0xff]
    %v1014 = vld [vmem:[#allocation7 + $0x574] sm:$0xf]
    %v1015 = vld [vmem:[#allocation7 + $0x578] sm:$0xff]
    %v1016 = vld [vmem:[#allocation7 + $0x580] sm:$0xff]
    %v1017 = vld [vmem:[#allocation7 + $0x588] sm:$0xff]
    %v1018 = vld [vmem:[#allocation7 + $0x590] sm:$0xf]
    %v1019 = vld [vmem:[#allocation7 + $0x594] sm:$0xff]
    %v1020 = vld [vmem:[#allocation7 + $0x59c] sm:$0xff]
    %v1021 = vld [vmem:[#allocation7 + $0x5a4] sm:$0xff]
    %v1022 = vld [vmem:[#allocation7 + $0x5ac] sm:$0xf]
    %v1023 = vld [vmem:[#allocation7 + $0x5b0] sm:$0xff]
    %v1024 = vld [vmem:[#allocation7 + $0x5b8] sm:$0xff]
    %v1025 = vld [vmem:[#allocation7 + $0x5c0] sm:$0xff]
    %v1026 = vld [vmem:[#allocation7 + $0x5c8] sm:$0xf]
    %v1027 = vld [vmem:[#allocation7 + $0x5cc] sm:$0xff]
    %v1028 = vld [vmem:[#allocation7 + $0x5d4] sm:$0xff]
    %v1029 = vld [vmem:[#allocation7 + $0x5dc] sm:$0xff]
    %v1030 = vld [vmem:[#allocation7 + $0x5e4] sm:$0xf]
    %v1031 = vld [vmem:[#allocation7 + $0x5e8] sm:$0xff]
    %v1032 = vld [vmem:[#allocation7 + $0x5f0] sm:$0xff]
    %v1033 = vld [vmem:[#allocation7 + $0x5f8] sm:$0xff]
    %v1034 = vld [vmem:[#allocation7 + $0x600] sm:$0xf]
    %v1035 = vld [vmem:[#allocation7 + $0x604] sm:$0xff]
    %v1036 = vld [vmem:[#allocation7 + $0x60c] sm:$0xff]
    %v1037 = vld [vmem:[#allocation7 + $0x614] sm:$0xff]
    %v1038 = vld [vmem:[#allocation7 + $0x61c] sm:$0xf]
    %v1039 = vld [vmem:[#allocation7 + $0x620] sm:$0xff]
    %v1040 = vld [vmem:[#allocation7 + $0x628] sm:$0xff]
    %v1041 = vld [vmem:[#allocation7 + $0x630] sm:$0xff]
    %v1042 = vld [vmem:[#allocation7 + $0x638] sm:$0xf]
    %v1043 = vld [vmem:[#allocation7 + $0x63c] sm:$0xff]
    %v1044 = vld [vmem:[#allocation7 + $0x644] sm:$0xff]
    %v1045 = vld [vmem:[#allocation7 + $0x64c] sm:$0xff]
    %v1046 = vld [vmem:[#allocation7 + $0x654] sm:$0xf]
    %v1047 = vld [vmem:[#allocation7 + $0x658] sm:$0xff]
    %v1048 = vld [vmem:[#allocation7 + $0x660] sm:$0xff]
    %v1049 = vld [vmem:[#allocation7 + $0x668] sm:$0xff]
    %v1050 = vld [vmem:[#allocation7 + $0x670] sm:$0xf]
    %v1051 = vld [vmem:[#allocation7 + $0x674] sm:$0xff]
    %v1052 = vld [vmem:[#allocation7 + $0x67c] sm:$0xff]
    %v1053 = vld [vmem:[#allocation7 + $0x684] sm:$0xff]
    %v1054 = vld [vmem:[#allocation7 + $0x68c] sm:$0xf]
    %v1055 = vld [vmem:[#allocation7 + $0x690] sm:$0xff]
    %v1056 = vld [vmem:[#allocation7 + $0x698] sm:$0xff]
    %v1057 = vld [vmem:[#allocation7 + $0x6a0] sm:$0xff]
    %v1058 = vld [vmem:[#allocation7 + $0x6a8] sm:$0xf]
    %v1059 = vld [vmem:[#allocation7 + $0x6ac] sm:$0xff]
    %v1060 = vld [vmem:[#allocation7 + $0x6b4] sm:$0xff]
    %v1061 = vld [vmem:[#allocation7 + $0x6bc] sm:$0xff]
    %v1062 = vld [vmem:[#allocation7 + $0x6c4] sm:$0xf]
    %v1063 = vld [vmem:[#allocation7 + $0x6c8] sm:$0xff]
    %v1064 = vld [vmem:[#allocation7 + $0x6d0] sm:$0xff]
    %v1065 = vld [vmem:[#allocation7 + $0x6d8] sm:$0xff]
    %v1066 = vld [vmem:[#allocation7 + $0x6e0] sm:$0xf]
    %v1067 = vld [vmem:[#allocation7 + $0x6e4] sm:$0xff]
    %v1068 = vld [vmem:[#allocation7 + $0x6ec] sm:$0xff]
    %v1069 = vld [vmem:[#allocation7 + $0x6f4] sm:$0xff]
    %v1070 = vld [vmem:[#allocation7 + $0x6fc] sm:$0xf]
    %v1327 = vunpack.c.l.b16 %v815
    %v1328 = vunpack.c.h.b16 %v815
    %v1329 = vunpack.c.l.b16 %v816
    %v1330 = vunpack.c.h.b16 %v816
    %v1331 = vunpack.c.l.b16 %v817
    %v1332 = vunpack.c.h.b16 %v817
    %v1333 = vunpack.c.l.b16 %v818
    %v1334 = vunpack.c.l.b16 %v819
    %v1335 = vunpack.c.h.b16 %v819
    %v1336 = vunpack.c.l.b16 %v820
    %v1337 = vunpack.c.h.b16 %v820
    %v1338 = vunpack.c.l.b16 %v821
    %v1339 = vunpack.c.h.b16 %v821
    %v1340 = vunpack.c.l.b16 %v822
    %v1341 = vunpack.c.l.b16 %v823
    %v1342 = vunpack.c.h.b16 %v823
    %v1343 = vunpack.c.l.b16 %v824
    %v1344 = vunpack.c.h.b16 %v824
    %v1345 = vunpack.c.l.b16 %v825
    %v1346 = vunpack.c.h.b16 %v825
    %v1347 = vunpack.c.l.b16 %v826
    %v1348 = vunpack.c.l.b16 %v827
    %v1349 = vunpack.c.h.b16 %v827
    %v1350 = vunpack.c.l.b16 %v828
    %v1351 = vunpack.c.h.b16 %v828
    %v1352 = vunpack.c.l.b16 %v829
    %v1353 = vunpack.c.h.b16 %v829
    %v1354 = vunpack.c.l.b16 %v830
    %v1355 = vunpack.c.l.b16 %v831
    %v1356 = vunpack.c.h.b16 %v831
    %v1357 = vunpack.c.l.b16 %v832
    %v1358 = vunpack.c.h.b16 %v832
    %v1359 = vunpack.c.l.b16 %v833
    %v1360 = vunpack.c.h.b16 %v833
    %v1361 = vunpack.c.l.b16 %v834
    %v1362 = vunpack.c.l.b16 %v835
    %v1363 = vunpack.c.h.b16 %v835
    %v1364 = vunpack.c.l.b16 %v836
    %v1365 = vunpack.c.h.b16 %v836
    %v1366 = vunpack.c.l.b16 %v837
    %v1367 = vunpack.c.h.b16 %v837
    %v1368 = vunpack.c.l.b16 %v838
    %v1369 = vunpack.c.l.b16 %v839
    %v1370 = vunpack.c.h.b16 %v839
    %v1371 = vunpack.c.l.b16 %v840
    %v1372 = vunpack.c.h.b16 %v840
    %v1373 = vunpack.c.l.b16 %v841
    %v1374 = vunpack.c.h.b16 %v841
    %v1375 = vunpack.c.l.b16 %v842
    %v1376 = vunpack.c.l.b16 %v843
    %v1377 = vunpack.c.h.b16 %v843
    %v1378 = vunpack.c.l.b16 %v844
    %v1379 = vunpack.c.h.b16 %v844
    %v1380 = vunpack.c.l.b16 %v845
    %v1381 = vunpack.c.h.b16 %v845
    %v1382 = vunpack.c.l.b16 %v846
    %v1383 = vunpack.c.l.b16 %v847
    %v1384 = vunpack.c.h.b16 %v847
    %v1385 = vunpack.c.l.b16 %v848
    %v1386 = vunpack.c.h.b16 %v848
    %v1387 = vunpack.c.l.b16 %v849
    %v1388 = vunpack.c.h.b16 %v849
    %v1389 = vunpack.c.l.b16 %v850
    %v1390 = vunpack.c.l.b16 %v851
    %v1391 = vunpack.c.h.b16 %v851
    %v1392 = vunpack.c.l.b16 %v852
    %v1393 = vunpack.c.h.b16 %v852
    %v1394 = vunpack.c.l.b16 %v853
    %v1395 = vunpack.c.h.b16 %v853
    %v1396 = vunpack.c.l.b16 %v854
    %v1397 = vunpack.c.l.b16 %v855
    %v1398 = vunpack.c.h.b16 %v855
    %v1399 = vunpack.c.l.b16 %v856
    %v1400 = vunpack.c.h.b16 %v856
    %v1401 = vunpack.c.l.b16 %v857
    %v1402 = vunpack.c.h.b16 %v857
    %v1403 = vunpack.c.l.b16 %v858
    %v1404 = vunpack.c.l.b16 %v859
    %v1405 = vunpack.c.h.b16 %v859
    %v1406 = vunpack.c.l.b16 %v860
    %v1407 = vunpack.c.h.b16 %v860
    %v1408 = vunpack.c.l.b16 %v861
    %v1409 = vunpack.c.h.b16 %v861
    %v1410 = vunpack.c.l.b16 %v862
    %v1411 = vunpack.c.l.b16 %v863
    %v1412 = vunpack.c.h.b16 %v863
    %v1413 = vunpack.c.l.b16 %v864
    %v1414 = vunpack.c.h.b16 %v864
    %v1415 = vunpack.c.l.b16 %v865
    %v1416 = vunpack.c.h.b16 %v865
    %v1417 = vunpack.c.l.b16 %v866
    %v1418 = vunpack.c.l.b16 %v867
    %v1419 = vunpack.c.h.b16 %v867
    %v1420 = vunpack.c.l.b16 %v868
    %v1421 = vunpack.c.h.b16 %v868
    %v1422 = vunpack.c.l.b16 %v869
    %v1423 = vunpack.c.h.b16 %v869
    %v1424 = vunpack.c.l.b16 %v870
    %v1425 = vunpack.c.l.b16 %v871
    %v1426 = vunpack.c.h.b16 %v871
    %v1427 = vunpack.c.l.b16 %v872
    %v1428 = vunpack.c.h.b16 %v872
    %v1429 = vunpack.c.l.b16 %v873
    %v1430 = vunpack.c.h.b16 %v873
    %v1431 = vunpack.c.l.b16 %v874
    %v1432 = vunpack.c.l.b16 %v875
    %v1433 = vunpack.c.h.b16 %v875
    %v1434 = vunpack.c.l.b16 %v876
    %v1435 = vunpack.c.h.b16 %v876
    %v1436 = vunpack.c.l.b16 %v877
    %v1437 = vunpack.c.h.b16 %v877
    %v1438 = vunpack.c.l.b16 %v878
    %v1439 = vunpack.c.l.b16 %v879
    %v1440 = vunpack.c.h.b16 %v879
    %v1441 = vunpack.c.l.b16 %v880
    %v1442 = vunpack.c.h.b16 %v880
    %v1443 = vunpack.c.l.b16 %v881
    %v1444 = vunpack.c.h.b16 %v881
    %v1445 = vunpack.c.l.b16 %v882
    %v1446 = vunpack.c.l.b16 %v883
    %v1447 = vunpack.c.h.b16 %v883
    %v1448 = vunpack.c.l.b16 %v884
    %v1449 = vunpack.c.h.b16 %v884
    %v1450 = vunpack.c.l.b16 %v885
    %v1451 = vunpack.c.h.b16 %v885
    %v1452 = vunpack.c.l.b16 %v886
    %v1453 = vunpack.c.l.b16 %v887
    %v1454 = vunpack.c.h.b16 %v887
    %v1455 = vunpack.c.l.b16 %v888
    %v1456 = vunpack.c.h.b16 %v888
    %v1457 = vunpack.c.l.b16 %v889
    %v1458 = vunpack.c.h.b16 %v889
    %v1459 = vunpack.c.l.b16 %v890
    %v1460 = vunpack.c.l.b16 %v891
    %v1461 = vunpack.c.h.b16 %v891
    %v1462 = vunpack.c.l.b16 %v892
    %v1463 = vunpack.c.h.b16 %v892
    %v1464 = vunpack.c.l.b16 %v893
    %v1465 = vunpack.c.h.b16 %v893
    %v1466 = vunpack.c.l.b16 %v894
    %v1467 = vunpack.c.l.b16 %v895
    %v1468 = vunpack.c.h.b16 %v895
    %v1469 = vunpack.c.l.b16 %v896
    %v1470 = vunpack.c.h.b16 %v896
    %v1471 = vunpack.c.l.b16 %v897
    %v1472 = vunpack.c.h.b16 %v897
    %v1473 = vunpack.c.l.b16 %v898
    %v1474 = vunpack.c.l.b16 %v899
    %v1475 = vunpack.c.h.b16 %v899
    %v1476 = vunpack.c.l.b16 %v900
    %v1477 = vunpack.c.h.b16 %v900
    %v1478 = vunpack.c.l.b16 %v901
    %v1479 = vunpack.c.h.b16 %v901
    %v1480 = vunpack.c.l.b16 %v902
    %v1481 = vunpack.c.l.b16 %v903
    %v1482 = vunpack.c.h.b16 %v903
    %v1483 = vunpack.c.l.b16 %v904
    %v1484 = vunpack.c.h.b16 %v904
    %v1485 = vunpack.c.l.b16 %v905
    %v1486 = vunpack.c.h.b16 %v905
    %v1487 = vunpack.c.l.b16 %v906
    %v1488 = vunpack.c.l.b16 %v907
    %v1489 = vunpack.c.h.b16 %v907
    %v1490 = vunpack.c.l.b16 %v908
    %v1491 = vunpack.c.h.b16 %v908
    %v1492 = vunpack.c.l.b16 %v909
    %v1493 = vunpack.c.h.b16 %v909
    %v1494 = vunpack.c.l.b16 %v910
    %v1495 = vunpack.c.l.b16 %v911
    %v1496 = vunpack.c.h.b16 %v911
    %v1497 = vunpack.c.l.b16 %v912
    %v1498 = vunpack.c.h.b16 %v912
    %v1499 = vunpack.c.l.b16 %v913
    %v1500 = vunpack.c.h.b16 %v913
    %v1501 = vunpack.c.l.b16 %v914
    %v1502 = vunpack.c.l.b16 %v915
    %v1503 = vunpack.c.h.b16 %v915
    %v1504 = vunpack.c.l.b16 %v916
    %v1505 = vunpack.c.h.b16 %v916
    %v1506 = vunpack.c.l.b16 %v917
    %v1507 = vunpack.c.h.b16 %v917
    %v1508 = vunpack.c.l.b16 %v918
    %v1509 = vunpack.c.l.b16 %v919
    %v1510 = vunpack.c.h.b16 %v919
    %v1511 = vunpack.c.l.b16 %v920
    %v1512 = vunpack.c.h.b16 %v920
    %v1513 = vunpack.c.l.b16 %v921
    %v1514 = vunpack.c.h.b16 %v921
    %v1515 = vunpack.c.l.b16 %v922
    %v1516 = vunpack.c.l.b16 %v923
    %v1517 = vunpack.c.h.b16 %v923
    %v1518 = vunpack.c.l.b16 %v924
    %v1519 = vunpack.c.h.b16 %v924
    %v1520 = vunpack.c.l.b16 %v925
    %v1521 = vunpack.c.h.b16 %v925
    %v1522 = vunpack.c.l.b16 %v926
    %v1523 = vunpack.c.l.b16 %v927
    %v1524 = vunpack.c.h.b16 %v927
    %v1525 = vunpack.c.l.b16 %v928
    %v1526 = vunpack.c.h.b16 %v928
    %v1527 = vunpack.c.l.b16 %v929
    %v1528 = vunpack.c.h.b16 %v929
    %v1529 = vunpack.c.l.b16 %v930
    %v1530 = vunpack.c.l.b16 %v931
    %v1531 = vunpack.c.h.b16 %v931
    %v1532 = vunpack.c.l.b16 %v932
    %v1533 = vunpack.c.h.b16 %v932
    %v1534 = vunpack.c.l.b16 %v933
    %v1535 = vunpack.c.h.b16 %v933
    %v1536 = vunpack.c.l.b16 %v934
    %v1537 = vunpack.c.l.b16 %v935
    %v1538 = vunpack.c.h.b16 %v935
    %v1539 = vunpack.c.l.b16 %v936
    %v1540 = vunpack.c.h.b16 %v936
    %v1541 = vunpack.c.l.b16 %v937
    %v1542 = vunpack.c.h.b16 %v937
    %v1543 = vunpack.c.l.b16 %v938
    %v1544 = vunpack.c.l.b16 %v939
    %v1545 = vunpack.c.h.b16 %v939
    %v1546 = vunpack.c.l.b16 %v940
    %v1547 = vunpack.c.h.b16 %v940
    %v1548 = vunpack.c.l.b16 %v941
    %v1549 = vunpack.c.h.b16 %v941
    %v1550 = vunpack.c.l.b16 %v942
    %v1551 = vunpack.c.l.b16 %v943
    %v1552 = vunpack.c.h.b16 %v943
    %v1553 = vunpack.c.l.b16 %v944
    %v1554 = vunpack.c.h.b16 %v944
    %v1555 = vunpack.c.l.b16 %v945
    %v1556 = vunpack.c.h.b16 %v945
    %v1557 = vunpack.c.l.b16 %v946
    %v1558 = vunpack.c.l.b16 %v947
    %v1559 = vunpack.c.h.b16 %v947
    %v1560 = vunpack.c.l.b16 %v948
    %v1561 = vunpack.c.h.b16 %v948
    %v1562 = vunpack.c.l.b16 %v949
    %v1563 = vunpack.c.h.b16 %v949
    %v1564 = vunpack.c.l.b16 %v950
    %v1565 = vunpack.c.l.b16 %v951
    %v1566 = vunpack.c.h.b16 %v951
    %v1567 = vunpack.c.l.b16 %v952
    %v1568 = vunpack.c.h.b16 %v952
    %v1569 = vunpack.c.l.b16 %v953
    %v1570 = vunpack.c.h.b16 %v953
    %v1571 = vunpack.c.l.b16 %v954
    %v1572 = vunpack.c.l.b16 %v955
    %v1573 = vunpack.c.h.b16 %v955
    %v1574 = vunpack.c.l.b16 %v956
    %v1575 = vunpack.c.h.b16 %v956
    %v1576 = vunpack.c.l.b16 %v957
    %v1577 = vunpack.c.h.b16 %v957
    %v1578 = vunpack.c.l.b16 %v958
    %v1579 = vunpack.c.l.b16 %v959
    %v1580 = vunpack.c.h.b16 %v959
    %v1581 = vunpack.c.l.b16 %v960
    %v1582 = vunpack.c.h.b16 %v960
    %v1583 = vunpack.c.l.b16 %v961
    %v1584 = vunpack.c.h.b16 %v961
    %v1585 = vunpack.c.l.b16 %v962
    %v1586 = vunpack.c.l.b16 %v963
    %v1587 = vunpack.c.h.b16 %v963
    %v1588 = vunpack.c.l.b16 %v964
    %v1589 = vunpack.c.h.b16 %v964
    %v1590 = vunpack.c.l.b16 %v965
    %v1591 = vunpack.c.h.b16 %v965
    %v1592 = vunpack.c.l.b16 %v966
    %v1593 = vunpack.c.l.b16 %v967
    %v1594 = vunpack.c.h.b16 %v967
    %v1595 = vunpack.c.l.b16 %v968
    %v1596 = vunpack.c.h.b16 %v968
    %v1597 = vunpack.c.l.b16 %v969
    %v1598 = vunpack.c.h.b16 %v969
    %v1599 = vunpack.c.l.b16 %v970
    %v1600 = vunpack.c.l.b16 %v971
    %v1601 = vunpack.c.h.b16 %v971
    %v1602 = vunpack.c.l.b16 %v972
    %v1603 = vunpack.c.h.b16 %v972
    %v1604 = vunpack.c.l.b16 %v973
    %v1605 = vunpack.c.h.b16 %v973
    %v1606 = vunpack.c.l.b16 %v974
    %v1607 = vunpack.c.l.b16 %v975
    %v1608 = vunpack.c.h.b16 %v975
    %v1609 = vunpack.c.l.b16 %v976
    %v1610 = vunpack.c.h.b16 %v976
    %v1611 = vunpack.c.l.b16 %v977
    %v1612 = vunpack.c.h.b16 %v977
    %v1613 = vunpack.c.l.b16 %v978
    %v1614 = vunpack.c.l.b16 %v979
    %v1615 = vunpack.c.h.b16 %v979
    %v1616 = vunpack.c.l.b16 %v980
    %v1617 = vunpack.c.h.b16 %v980
    %v1618 = vunpack.c.l.b16 %v981
    %v1619 = vunpack.c.h.b16 %v981
    %v1620 = vunpack.c.l.b16 %v982
    %v1621 = vunpack.c.l.b16 %v983
    %v1622 = vunpack.c.h.b16 %v983
    %v1623 = vunpack.c.l.b16 %v984
    %v1624 = vunpack.c.h.b16 %v984
    %v1625 = vunpack.c.l.b16 %v985
    %v1626 = vunpack.c.h.b16 %v985
    %v1627 = vunpack.c.l.b16 %v986
    %v1628 = vunpack.c.l.b16 %v987
    %v1629 = vunpack.c.h.b16 %v987
    %v1630 = vunpack.c.l.b16 %v988
    %v1631 = vunpack.c.h.b16 %v988
    %v1632 = vunpack.c.l.b16 %v989
    %v1633 = vunpack.c.h.b16 %v989
    %v1634 = vunpack.c.l.b16 %v990
    %v1635 = vunpack.c.l.b16 %v991
    %v1636 = vunpack.c.h.b16 %v991
    %v1637 = vunpack.c.l.b16 %v992
    %v1638 = vunpack.c.h.b16 %v992
    %v1639 = vunpack.c.l.b16 %v993
    %v1640 = vunpack.c.h.b16 %v993
    %v1641 = vunpack.c.l.b16 %v994
    %v1642 = vunpack.c.l.b16 %v995
    %v1643 = vunpack.c.h.b16 %v995
    %v1644 = vunpack.c.l.b16 %v996
    %v1645 = vunpack.c.h.b16 %v996
    %v1646 = vunpack.c.l.b16 %v997
    %v1647 = vunpack.c.h.b16 %v997
    %v1648 = vunpack.c.l.b16 %v998
    %v1649 = vunpack.c.l.b16 %v999
    %v1650 = vunpack.c.h.b16 %v999
    %v1651 = vunpack.c.l.b16 %v1000
    %v1652 = vunpack.c.h.b16 %v1000
    %v1653 = vunpack.c.l.b16 %v1001
    %v1654 = vunpack.c.h.b16 %v1001
    %v1655 = vunpack.c.l.b16 %v1002
    %v1656 = vunpack.c.l.b16 %v1003
    %v1657 = vunpack.c.h.b16 %v1003
    %v1658 = vunpack.c.l.b16 %v1004
    %v1659 = vunpack.c.h.b16 %v1004
    %v1660 = vunpack.c.l.b16 %v1005
    %v1661 = vunpack.c.h.b16 %v1005
    %v1662 = vunpack.c.l.b16 %v1006
    %v1663 = vunpack.c.l.b16 %v1007
    %v1664 = vunpack.c.h.b16 %v1007
    %v1665 = vunpack.c.l.b16 %v1008
    %v1666 = vunpack.c.h.b16 %v1008
    %v1667 = vunpack.c.l.b16 %v1009
    %v1668 = vunpack.c.h.b16 %v1009
    %v1669 = vunpack.c.l.b16 %v1010
    %v1670 = vunpack.c.l.b16 %v1011
    %v1671 = vunpack.c.h.b16 %v1011
    %v1672 = vunpack.c.l.b16 %v1012
    %v1673 = vunpack.c.h.b16 %v1012
    %v1674 = vunpack.c.l.b16 %v1013
    %v1675 = vunpack.c.h.b16 %v1013
    %v1676 = vunpack.c.l.b16 %v1014
    %v1677 = vunpack.c.l.b16 %v1015
    %v1678 = vunpack.c.h.b16 %v1015
    %v1679 = vunpack.c.l.b16 %v1016
    %v1680 = vunpack.c.h.b16 %v1016
    %v1681 = vunpack.c.l.b16 %v1017
    %v1682 = vunpack.c.h.b16 %v1017
    %v1683 = vunpack.c.l.b16 %v1018
    %v1684 = vunpack.c.l.b16 %v1019
    %v1685 = vunpack.c.h.b16 %v1019
    %v1686 = vunpack.c.l.b16 %v1020
    %v1687 = vunpack.c.h.b16 %v1020
    %v1688 = vunpack.c.l.b16 %v1021
    %v1689 = vunpack.c.h.b16 %v1021
    %v1690 = vunpack.c.l.b16 %v1022
    %v1691 = vunpack.c.l.b16 %v1023
    %v1692 = vunpack.c.h.b16 %v1023
    %v1693 = vunpack.c.l.b16 %v1024
    %v1694 = vunpack.c.h.b16 %v1024
    %v1695 = vunpack.c.l.b16 %v1025
    %v1696 = vunpack.c.h.b16 %v1025
    %v1697 = vunpack.c.l.b16 %v1026
    %v1698 = vunpack.c.l.b16 %v1027
    %v1699 = vunpack.c.h.b16 %v1027
    %v1700 = vunpack.c.l.b16 %v1028
    %v1701 = vunpack.c.h.b16 %v1028
    %v1702 = vunpack.c.l.b16 %v1029
    %v1703 = vunpack.c.h.b16 %v1029
    %v1704 = vunpack.c.l.b16 %v1030
    %v1705 = vunpack.c.l.b16 %v1031
    %v1706 = vunpack.c.h.b16 %v1031
    %v1707 = vunpack.c.l.b16 %v1032
    %v1708 = vunpack.c.h.b16 %v1032
    %v1709 = vunpack.c.l.b16 %v1033
    %v1710 = vunpack.c.h.b16 %v1033
    %v1711 = vunpack.c.l.b16 %v1034
    %v1712 = vunpack.c.l.b16 %v1035
    %v1713 = vunpack.c.h.b16 %v1035
    %v1714 = vunpack.c.l.b16 %v1036
    %v1715 = vunpack.c.h.b16 %v1036
    %v1716 = vunpack.c.l.b16 %v1037
    %v1717 = vunpack.c.h.b16 %v1037
    %v1718 = vunpack.c.l.b16 %v1038
    %v1719 = vunpack.c.l.b16 %v1039
    %v1720 = vunpack.c.h.b16 %v1039
    %v1721 = vunpack.c.l.b16 %v1040
    %v1722 = vunpack.c.h.b16 %v1040
    %v1723 = vunpack.c.l.b16 %v1041
    %v1724 = vunpack.c.h.b16 %v1041
    %v1725 = vunpack.c.l.b16 %v1042
    %v1726 = vunpack.c.l.b16 %v1043
    %v1727 = vunpack.c.h.b16 %v1043
    %v1728 = vunpack.c.l.b16 %v1044
    %v1729 = vunpack.c.h.b16 %v1044
    %v1730 = vunpack.c.l.b16 %v1045
    %v1731 = vunpack.c.h.b16 %v1045
    %v1732 = vunpack.c.l.b16 %v1046
    %v1733 = vunpack.c.l.b16 %v1047
    %v1734 = vunpack.c.h.b16 %v1047
    %v1735 = vunpack.c.l.b16 %v1048
    %v1736 = vunpack.c.h.b16 %v1048
    %v1737 = vunpack.c.l.b16 %v1049
    %v1738 = vunpack.c.h.b16 %v1049
    %v1739 = vunpack.c.l.b16 %v1050
    %v1740 = vunpack.c.l.b16 %v1051
    %v1741 = vunpack.c.h.b16 %v1051
    %v1742 = vunpack.c.l.b16 %v1052
    %v1743 = vunpack.c.h.b16 %v1052
    %v1744 = vunpack.c.l.b16 %v1053
    %v1745 = vunpack.c.h.b16 %v1053
    %v1746 = vunpack.c.l.b16 %v1054
    %v1747 = vunpack.c.l.b16 %v1055
    %v1748 = vunpack.c.h.b16 %v1055
    %v1749 = vunpack.c.l.b16 %v1056
    %v1750 = vunpack.c.h.b16 %v1056
    %v1751 = vunpack.c.l.b16 %v1057
    %v1752 = vunpack.c.h.b16 %v1057
    %v1753 = vunpack.c.l.b16 %v1058
    %v1754 = vunpack.c.l.b16 %v1059
    %v1755 = vunpack.c.h.b16 %v1059
    %v1756 = vunpack.c.l.b16 %v1060
    %v1757 = vunpack.c.h.b16 %v1060
    %v1758 = vunpack.c.l.b16 %v1061
    %v1759 = vunpack.c.h.b16 %v1061
    %v1760 = vunpack.c.l.b16 %v1062
    %v1761 = vunpack.c.l.b16 %v1063
    %v1762 = vunpack.c.h.b16 %v1063
    %v1763 = vunpack.c.l.b16 %v1064
    %v1764 = vunpack.c.h.b16 %v1064
    %v1765 = vunpack.c.l.b16 %v1065
    %v1766 = vunpack.c.h.b16 %v1065
    %v1767 = vunpack.c.l.b16 %v1066
    %v1768 = vunpack.c.l.b16 %v1067
    %v1769 = vunpack.c.h.b16 %v1067
    %v1770 = vunpack.c.l.b16 %v1068
    %v1771 = vunpack.c.h.b16 %v1068
    %v1772 = vunpack.c.l.b16 %v1069
    %v1773 = vunpack.c.h.b16 %v1069
    %v1774 = vunpack.c.l.b16 %v1070
    %v1775 = vpack.c.b16 %v1334, %v1327
    %v1776 = vpack.c.b16 %v1335, %v1328
    %v1777 = vpack.c.b16 %v1336, %v1329
    %v1778 = vpack.c.b16 %v1337, %v1330
    %v1779 = vpack.c.b16 %v1338, %v1331
    %v1780 = vpack.c.b16 %v1339, %v1332
    %v1781 = vpack.c.b16 %v1340, %v1333
    %v1782 = vpack.c.b16 %v1348, %v1341
    %v1783 = vpack.c.b16 %v1349, %v1342
    %v1784 = vpack.c.b16 %v1350, %v1343
    %v1785 = vpack.c.b16 %v1351, %v1344
    %v1786 = vpack.c.b16 %v1352, %v1345
    %v1787 = vpack.c.b16 %v1353, %v1346
    %v1788 = vpack.c.b16 %v1354, %v1347
    %v1789 = vpack.c.b16 %v1362, %v1355
    %v1790 = vpack.c.b16 %v1363, %v1356
    %v1791 = vpack.c.b16 %v1364, %v1357
    %v1792 = vpack.c.b16 %v1365, %v1358
    %v1793 = vpack.c.b16 %v1366, %v1359
    %v1794 = vpack.c.b16 %v1367, %v1360
    %v1795 = vpack.c.b16 %v1368, %v1361
    %v1796 = vpack.c.b16 %v1376, %v1369
    %v1797 = vpack.c.b16 %v1377, %v1370
    %v1798 = vpack.c.b16 %v1378, %v1371
    %v1799 = vpack.c.b16 %v1379, %v1372
    %v1800 = vpack.c.b16 %v1380, %v1373
    %v1801 = vpack.c.b16 %v1381, %v1374
    %v1802 = vpack.c.b16 %v1382, %v1375
    %v1803 = vpack.c.b16 %v1390, %v1383
    %v1804 = vpack.c.b16 %v1391, %v1384
    %v1805 = vpack.c.b16 %v1392, %v1385
    %v1806 = vpack.c.b16 %v1393, %v1386
    %v1807 = vpack.c.b16 %v1394, %v1387
    %v1808 = vpack.c.b16 %v1395, %v1388
    %v1809 = vpack.c.b16 %v1396, %v1389
    %v1810 = vpack.c.b16 %v1404, %v1397
    %v1811 = vpack.c.b16 %v1405, %v1398
    %v1812 = vpack.c.b16 %v1406, %v1399
    %v1813 = vpack.c.b16 %v1407, %v1400
    %v1814 = vpack.c.b16 %v1408, %v1401
    %v1815 = vpack.c.b16 %v1409, %v1402
    %v1816 = vpack.c.b16 %v1410, %v1403
    %v1817 = vpack.c.b16 %v1418, %v1411
    %v1818 = vpack.c.b16 %v1419, %v1412
    %v1819 = vpack.c.b16 %v1420, %v1413
    %v1820 = vpack.c.b16 %v1421, %v1414
    %v1821 = vpack.c.b16 %v1422, %v1415
    %v1822 = vpack.c.b16 %v1423, %v1416
    %v1823 = vpack.c.b16 %v1424, %v1417
    %v1824 = vpack.c.b16 %v1432, %v1425
    %v1825 = vpack.c.b16 %v1433, %v1426
    %v1826 = vpack.c.b16 %v1434, %v1427
    %v1827 = vpack.c.b16 %v1435, %v1428
    %v1828 = vpack.c.b16 %v1436, %v1429
    %v1829 = vpack.c.b16 %v1437, %v1430
    %v1830 = vpack.c.b16 %v1438, %v1431
    %v1831 = vpack.c.b16 %v1446, %v1439
    %v1832 = vpack.c.b16 %v1447, %v1440
    %v1833 = vpack.c.b16 %v1448, %v1441
    %v1834 = vpack.c.b16 %v1449, %v1442
    %v1835 = vpack.c.b16 %v1450, %v1443
    %v1836 = vpack.c.b16 %v1451, %v1444
    %v1837 = vpack.c.b16 %v1452, %v1445
    %v1838 = vpack.c.b16 %v1460, %v1453
    %v1839 = vpack.c.b16 %v1461, %v1454
    %v1840 = vpack.c.b16 %v1462, %v1455
    %v1841 = vpack.c.b16 %v1463, %v1456
    %v1842 = vpack.c.b16 %v1464, %v1457
    %v1843 = vpack.c.b16 %v1465, %v1458
    %v1844 = vpack.c.b16 %v1466, %v1459
    %v1845 = vpack.c.b16 %v1474, %v1467
    %v1846 = vpack.c.b16 %v1475, %v1468
    %v1847 = vpack.c.b16 %v1476, %v1469
    %v1848 = vpack.c.b16 %v1477, %v1470
    %v1849 = vpack.c.b16 %v1478, %v1471
    %v1850 = vpack.c.b16 %v1479, %v1472
    %v1851 = vpack.c.b16 %v1480, %v1473
    %v1852 = vpack.c.b16 %v1488, %v1481
    %v1853 = vpack.c.b16 %v1489, %v1482
    %v1854 = vpack.c.b16 %v1490, %v1483
    %v1855 = vpack.c.b16 %v1491, %v1484
    %v1856 = vpack.c.b16 %v1492, %v1485
    %v1857 = vpack.c.b16 %v1493, %v1486
    %v1858 = vpack.c.b16 %v1494, %v1487
    %v1859 = vpack.c.b16 %v1502, %v1495
    %v1860 = vpack.c.b16 %v1503, %v1496
    %v1861 = vpack.c.b16 %v1504, %v1497
    %v1862 = vpack.c.b16 %v1505, %v1498
    %v1863 = vpack.c.b16 %v1506, %v1499
    %v1864 = vpack.c.b16 %v1507, %v1500
    %v1865 = vpack.c.b16 %v1508, %v1501
    %v1866 = vpack.c.b16 %v1516, %v1509
    %v1867 = vpack.c.b16 %v1517, %v1510
    %v1868 = vpack.c.b16 %v1518, %v1511
    %v1869 = vpack.c.b16 %v1519, %v1512
    %v1870 = vpack.c.b16 %v1520, %v1513
    %v1871 = vpack.c.b16 %v1521, %v1514
    %v1872 = vpack.c.b16 %v1522, %v1515
    %v1873 = vpack.c.b16 %v1530, %v1523
    %v1874 = vpack.c.b16 %v1531, %v1524
    %v1875 = vpack.c.b16 %v1532, %v1525
    %v1876 = vpack.c.b16 %v1533, %v1526
    %v1877 = vpack.c.b16 %v1534, %v1527
    %v1878 = vpack.c.b16 %v1535, %v1528
    %v1879 = vpack.c.b16 %v1536, %v1529
    %v1880 = vpack.c.b16 %v1544, %v1537
    %v1881 = vpack.c.b16 %v1545, %v1538
    %v1882 = vpack.c.b16 %v1546, %v1539
    %v1883 = vpack.c.b16 %v1547, %v1540
    %v1884 = vpack.c.b16 %v1548, %v1541
    %v1885 = vpack.c.b16 %v1549, %v1542
    %v1886 = vpack.c.b16 %v1550, %v1543
    %v1887 = vpack.c.b16 %v1558, %v1551
    %v1888 = vpack.c.b16 %v1559, %v1552
    %v1889 = vpack.c.b16 %v1560, %v1553
    %v1890 = vpack.c.b16 %v1561, %v1554
    %v1891 = vpack.c.b16 %v1562, %v1555
    %v1892 = vpack.c.b16 %v1563, %v1556
    %v1893 = vpack.c.b16 %v1564, %v1557
    %v1894 = vpack.c.b16 %v1572, %v1565
    %v1895 = vpack.c.b16 %v1573, %v1566
    %v1896 = vpack.c.b16 %v1574, %v1567
    %v1897 = vpack.c.b16 %v1575, %v1568
    %v1898 = vpack.c.b16 %v1576, %v1569
    %v1899 = vpack.c.b16 %v1577, %v1570
    %v1900 = vpack.c.b16 %v1578, %v1571
    %v1901 = vpack.c.b16 %v1586, %v1579
    %v1902 = vpack.c.b16 %v1587, %v1580
    %v1903 = vpack.c.b16 %v1588, %v1581
    %v1904 = vpack.c.b16 %v1589, %v1582
    %v1905 = vpack.c.b16 %v1590, %v1583
    %v1906 = vpack.c.b16 %v1591, %v1584
    %v1907 = vpack.c.b16 %v1592, %v1585
    %v1908 = vpack.c.b16 %v1600, %v1593
    %v1909 = vpack.c.b16 %v1601, %v1594
    %v1910 = vpack.c.b16 %v1602, %v1595
    %v1911 = vpack.c.b16 %v1603, %v1596
    %v1912 = vpack.c.b16 %v1604, %v1597
    %v1913 = vpack.c.b16 %v1605, %v1598
    %v1914 = vpack.c.b16 %v1606, %v1599
    %v1915 = vpack.c.b16 %v1614, %v1607
    %v1916 = vpack.c.b16 %v1615, %v1608
    %v1917 = vpack.c.b16 %v1616, %v1609
    %v1918 = vpack.c.b16 %v1617, %v1610
    %v1919 = vpack.c.b16 %v1618, %v1611
    %v1920 = vpack.c.b16 %v1619, %v1612
    %v1921 = vpack.c.b16 %v1620, %v1613
    %v1922 = vpack.c.b16 %v1628, %v1621
    %v1923 = vpack.c.b16 %v1629, %v1622
    %v1924 = vpack.c.b16 %v1630, %v1623
    %v1925 = vpack.c.b16 %v1631, %v1624
    %v1926 = vpack.c.b16 %v1632, %v1625
    %v1927 = vpack.c.b16 %v1633, %v1626
    %v1928 = vpack.c.b16 %v1634, %v1627
    %v1929 = vpack.c.b16 %v1642, %v1635
    %v1930 = vpack.c.b16 %v1643, %v1636
    %v1931 = vpack.c.b16 %v1644, %v1637
    %v1932 = vpack.c.b16 %v1645, %v1638
    %v1933 = vpack.c.b16 %v1646, %v1639
    %v1934 = vpack.c.b16 %v1647, %v1640
    %v1935 = vpack.c.b16 %v1648, %v1641
    %v1936 = vpack.c.b16 %v1656, %v1649
    %v1937 = vpack.c.b16 %v1657, %v1650
    %v1938 = vpack.c.b16 %v1658, %v1651
    %v1939 = vpack.c.b16 %v1659, %v1652
    %v1940 = vpack.c.b16 %v1660, %v1653
    %v1941 = vpack.c.b16 %v1661, %v1654
    %v1942 = vpack.c.b16 %v1662, %v1655
    %v1943 = vpack.c.b16 %v1670, %v1663
    %v1944 = vpack.c.b16 %v1671, %v1664
    %v1945 = vpack.c.b16 %v1672, %v1665
    %v1946 = vpack.c.b16 %v1673, %v1666
    %v1947 = vpack.c.b16 %v1674, %v1667
    %v1948 = vpack.c.b16 %v1675, %v1668
    %v1949 = vpack.c.b16 %v1676, %v1669
    %v1950 = vpack.c.b16 %v1684, %v1677
    %v1951 = vpack.c.b16 %v1685, %v1678
    %v1952 = vpack.c.b16 %v1686, %v1679
    %v1953 = vpack.c.b16 %v1687, %v1680
    %v1954 = vpack.c.b16 %v1688, %v1681
    %v1955 = vpack.c.b16 %v1689, %v1682
    %v1956 = vpack.c.b16 %v1690, %v1683
    %v1957 = vpack.c.b16 %v1698, %v1691
    %v1958 = vpack.c.b16 %v1699, %v1692
    %v1959 = vpack.c.b16 %v1700, %v1693
    %v1960 = vpack.c.b16 %v1701, %v1694
    %v1961 = vpack.c.b16 %v1702, %v1695
    %v1962 = vpack.c.b16 %v1703, %v1696
    %v1963 = vpack.c.b16 %v1704, %v1697
    %v1964 = vpack.c.b16 %v1712, %v1705
    %v1965 = vpack.c.b16 %v1713, %v1706
    %v1966 = vpack.c.b16 %v1714, %v1707
    %v1967 = vpack.c.b16 %v1715, %v1708
    %v1968 = vpack.c.b16 %v1716, %v1709
    %v1969 = vpack.c.b16 %v1717, %v1710
    %v1970 = vpack.c.b16 %v1718, %v1711
    %v1971 = vpack.c.b16 %v1726, %v1719
    %v1972 = vpack.c.b16 %v1727, %v1720
    %v1973 = vpack.c.b16 %v1728, %v1721
    %v1974 = vpack.c.b16 %v1729, %v1722
    %v1975 = vpack.c.b16 %v1730, %v1723
    %v1976 = vpack.c.b16 %v1731, %v1724
    %v1977 = vpack.c.b16 %v1732, %v1725
    %v1978 = vpack.c.b16 %v1740, %v1733
    %v1979 = vpack.c.b16 %v1741, %v1734
    %v1980 = vpack.c.b16 %v1742, %v1735
    %v1981 = vpack.c.b16 %v1743, %v1736
    %v1982 = vpack.c.b16 %v1744, %v1737
    %v1983 = vpack.c.b16 %v1745, %v1738
    %v1984 = vpack.c.b16 %v1746, %v1739
    %v1985 = vpack.c.b16 %v1754, %v1747
    %v1986 = vpack.c.b16 %v1755, %v1748
    %v1987 = vpack.c.b16 %v1756, %v1749
    %v1988 = vpack.c.b16 %v1757, %v1750
    %v1989 = vpack.c.b16 %v1758, %v1751
    %v1990 = vpack.c.b16 %v1759, %v1752
    %v1991 = vpack.c.b16 %v1760, %v1753
    %v1992 = vpack.c.b16 %v1768, %v1761
    %v1993 = vpack.c.b16 %v1769, %v1762
    %v1994 = vpack.c.b16 %v1770, %v1763
    %v1995 = vpack.c.b16 %v1771, %v1764
    %v1996 = vpack.c.b16 %v1772, %v1765
    %v1997 = vpack.c.b16 %v1773, %v1766
    %v1998 = vpack.c.b16 %v1774, %v1767
    %2223 = vmatprep.subr.bf16.mxu0 %v1776
    %2224 = vmatpush1.bf16.msra.mxu0 %v1775
    %2225 = vmatprep.subr.bf16.mxu0 %v1783
    %2226 = vmatpush1.bf16.msra.mxu0 %v1782
    %2227 = vmatprep.subr.bf16.mxu0 %v1790
    %2228 = vmatpush1.bf16.msra.mxu0 %v1789
    %2229 = vmatprep.subr.bf16.mxu0 %v1797
    %2230 = vmatpush1.bf16.msra.mxu0 %v1796
    %2231 = vmatprep.subr.bf16.mxu0 %v1804
    %2232 = vmatpush1.bf16.msra.mxu0 %v1803
    %2233 = vmatprep.subr.bf16.mxu0 %v1811
    %2234 = vmatpush1.bf16.msra.mxu0 %v1810
    %2235 = vmatprep.subr.bf16.mxu0 %v1818
    %2236 = vmatpush1.bf16.msra.mxu0 %v1817
    %2237 = vmatprep.subr.bf16.mxu0 %v1825
    %2238 = vmatpush1.bf16.msra.mxu0 %v1824
    %2239 = vmatprep.subr.bf16.mxu0 %v1832
    %2240 = vmatpush1.bf16.msra.mxu0 %v1831
    %2241 = vmatprep.subr.bf16.mxu0 %v1839
    %2242 = vmatpush1.bf16.msra.mxu0 %v1838
    %2243 = vmatprep.subr.bf16.mxu0 %v1846
    %2244 = vmatpush1.bf16.msra.mxu0 %v1845
    %2245 = vmatprep.subr.bf16.mxu0 %v1853
    %2246 = vmatpush1.bf16.msra.mxu0 %v1852
    %2247 = vmatprep.subr.bf16.mxu0 %v1860
    %2248 = vmatpush1.bf16.msra.mxu0 %v1859
    %2249 = vmatprep.subr.bf16.mxu0 %v1867
    %2250 = vmatpush1.bf16.msra.mxu0 %v1866
    %2251 = vmatprep.subr.bf16.mxu0 %v1874
    %2252 = vmatpush1.bf16.msra.mxu0 %v1873
    %2253 = vmatprep.subr.bf16.mxu0 %v1881
    %2254 = vmatpush1.bf16.msra.mxu0 %v1880
    %2255 = vmatprep.mubr.bf16.mxu0 %v812
    %2256 = vmatmul.mubr.bf16.gmra.mrb[0].mxu0 %v811
    %v2257 = vpop.f32.mrb[0].mxu0
    %v2258 = vadd.f32 0.0, %v2257
    %v2259 = vpop.f32.mrb[0].mxu0
    %v2260 = vadd.f32 0.0, %v2259
    %v2261 = vpop.f32.mrb[0].mxu0
    %v2262 = vadd.f32 0.0, %v2261
    %v2263 = vpop.f32.mrb[0].mxu0
    %v2264 = vadd.f32 0.0, %v2263
    %2265 = vdwg.mxu0
    %2266 = vmatprep.subr.bf16.mxu0 %v1888
    %2267 = vmatpush1.bf16.msra.mxu0 %v1887
    %2268 = vmatprep.subr.bf16.mxu0 %v1895
    %2269 = vmatpush1.bf16.msra.mxu0 %v1894
    %2270 = vmatprep.subr.bf16.mxu0 %v1902
    %2271 = vmatpush1.bf16.msra.mxu0 %v1901
    %2272 = vmatprep.subr.bf16.mxu0 %v1909
    %2273 = vmatpush1.bf16.msra.mxu0 %v1908
    %2274 = vmatprep.subr.bf16.mxu0 %v1916
    %2275 = vmatpush1.bf16.msra.mxu0 %v1915
    %2276 = vmatprep.subr.bf16.mxu0 %v1923
    %2277 = vmatpush1.bf16.msra.mxu0 %v1922
    %2278 = vmatprep.subr.bf16.mxu0 %v1930
    %2279 = vmatpush1.bf16.msra.mxu0 %v1929
    %2280 = vmatprep.subr.bf16.mxu0 %v1937
    %2281 = vmatpush1.bf16.msra.mxu0 %v1936
    %2282 = vmatprep.subr.bf16.mxu0 %v1944
    %2283 = vmatpush1.bf16.msra.mxu0 %v1943
    %2284 = vmatprep.subr.bf16.mxu0 %v1951
    %2285 = vmatpush1.bf16.msra.mxu0 %v1950
    %2286 = vmatprep.subr.bf16.mxu0 %v1958
    %2287 = vmatpush1.bf16.msra.mxu0 %v1957
    %2288 = vmatprep.subr.bf16.mxu0 %v1965
    %2289 = vmatpush1.bf16.msra.mxu0 %v1964
    %2290 = vmatprep.subr.bf16.mxu0 %v1972
    %2291 = vmatpush1.bf16.msra.mxu0 %v1971
    %2292 = vmatprep.subr.bf16.mxu0 %v1979
    %2293 = vmatpush1.bf16.msra.mxu0 %v1978
    %2294 = vmatprep.subr.bf16.mxu0 %v1986
    %2295 = vmatpush1.bf16.msra.mxu0 %v1985
    %2296 = vmatprep.subr.bf16.mxu0 %v1993
    %2297 = vmatpush1.bf16.msra.mxu0 %v1992
    %2298 = vmatprep.mubr.bf16.mxu0 %v814
    %2299 = vmatmul.mubr.bf16.gmra.mrb[0].mxu0 %v813
    %v2300 = vpop.f32.mrb[0].mxu0
    %v2301 = vadd.f32 %v2258, %v2300
    %v2302 = vpop.f32.mrb[0].mxu0
    %v2303 = vadd.f32 %v2260, %v2302
    %v2304 = vpop.f32.mrb[0].mxu0
    %v2305 = vadd.f32 %v2262, %v2304
    %v2306 = vpop.f32.mrb[0].mxu0
    %v2307 = vadd.f32 %v2264, %v2306
    %2308 = vdwg.mxu0
    %2309 = vmatprep.subr.bf16.mxu0 %v1778
    %2310 = vmatpush1.bf16.msra.mxu0 %v1777
    %2311 = vmatprep.subr.bf16.mxu0 %v1785
    %2312 = vmatpush1.bf16.msra.mxu0 %v1784
    %2313 = vmatprep.subr.bf16.mxu0 %v1792
    %2314 = vmatpush1.bf16.msra.mxu0 %v1791
    %2315 = vmatprep.subr.bf16.mxu0 %v1799
    %2316 = vmatpush1.bf16.msra.mxu0 %v1798
    %2317 = vmatprep.subr.bf16.mxu0 %v1806
    %2318 = vmatpush1.bf16.msra.mxu0 %v1805
    %2319 = vmatprep.subr.bf16.mxu0 %v1813
    %2320 = vmatpush1.bf16.msra.mxu0 %v1812
    %2321 = vmatprep.subr.bf16.mxu0 %v1820
    %2322 = vmatpush1.bf16.msra.mxu0 %v1819
    %2323 = vmatprep.subr.bf16.mxu0 %v1827
    %2324 = vmatpush1.bf16.msra.mxu0 %v1826
    %2325 = vmatprep.subr.bf16.mxu0 %v1834
    %2326 = vmatpush1.bf16.msra.mxu0 %v1833
    %2327 = vmatprep.subr.bf16.mxu0 %v1841
    %2328 = vmatpush1.bf16.msra.mxu0 %v1840
    %2329 = vmatprep.subr.bf16.mxu0 %v1848
    %2330 = vmatpush1.bf16.msra.mxu0 %v1847
    %2331 = vmatprep.subr.bf16.mxu0 %v1855
    %2332 = vmatpush1.bf16.msra.mxu0 %v1854
    %2333 = vmatprep.subr.bf16.mxu0 %v1862
    %2334 = vmatpush1.bf16.msra.mxu0 %v1861
    %2335 = vmatprep.subr.bf16.mxu0 %v1869
    %2336 = vmatpush1.bf16.msra.mxu0 %v1868
    %2337 = vmatprep.subr.bf16.mxu0 %v1876
    %2338 = vmatpush1.bf16.msra.mxu0 %v1875
    %2339 = vmatprep.subr.bf16.mxu0 %v1883
    %2340 = vmatpush1.bf16.msra.mxu0 %v1882
    %2341 = vmatprep.mubr.bf16.mxu0 %v812
    %2342 = vmatmul.mubr.bf16.gmra.mrb[0].mxu0 %v811
    %v2343 = vpop.f32.mrb[0].mxu0
    %v2344 = vadd.f32 0.0, %v2343
    %v2345 = vpop.f32.mrb[0].mxu0
    %v2346 = vadd.f32 0.0, %v2345
    %v2347 = vpop.f32.mrb[0].mxu0
    %v2348 = vadd.f32 0.0, %v2347
    %v2349 = vpop.f32.mrb[0].mxu0
    %v2350 = vadd.f32 0.0, %v2349
    %2351 = vdwg.mxu0
    %2352 = vmatprep.subr.bf16.mxu0 %v1890
    %2353 = vmatpush1.bf16.msra.mxu0 %v1889
    %2354 = vmatprep.subr.bf16.mxu0 %v1897
    %2355 = vmatpush1.bf16.msra.mxu0 %v1896
    %2356 = vmatprep.subr.bf16.mxu0 %v1904
    %2357 = vmatpush1.bf16.msra.mxu0 %v1903
    %2358 = vmatprep.subr.bf16.mxu0 %v1911
    %2359 = vmatpush1.bf16.msra.mxu0 %v1910
    %2360 = vmatprep.subr.bf16.mxu0 %v1918
    %2361 = vmatpush1.bf16.msra.mxu0 %v1917
    %2362 = vmatprep.subr.bf16.mxu0 %v1925
    %2363 = vmatpush1.bf16.msra.mxu0 %v1924
    %2364 = vmatprep.subr.bf16.mxu0 %v1932
    %2365 = vmatpush1.bf16.msra.mxu0 %v1931
    %2366 = vmatprep.subr.bf16.mxu0 %v1939
    %2367 = vmatpush1.bf16.msra.mxu0 %v1938
    %2368 = vmatprep.subr.bf16.mxu0 %v1946
    %2369 = vmatpush1.bf16.msra.mxu0 %v1945
    %2370 = vmatprep.subr.bf16.mxu0 %v1953
    %2371 = vmatpush1.bf16.msra.mxu0 %v1952
    %2372 = vmatprep.subr.bf16.mxu0 %v1960
    %2373 = vmatpush1.bf16.msra.mxu0 %v1959
    %2374 = vmatprep.subr.bf16.mxu0 %v1967
    %2375 = vmatpush1.bf16.msra.mxu0 %v1966
    %2376 = vmatprep.subr.bf16.mxu0 %v1974
    %2377 = vmatpush1.bf16.msra.mxu0 %v1973
    %2378 = vmatprep.subr.bf16.mxu0 %v1981
    %2379 = vmatpush1.bf16.msra.mxu0 %v1980
    %2380 = vmatprep.subr.bf16.mxu0 %v1988
    %2381 = vmatpush1.bf16.msra.mxu0 %v1987
    %2382 = vmatprep.subr.bf16.mxu0 %v1995
    %2383 = vmatpush1.bf16.msra.mxu0 %v1994
    %2384 = vmatprep.mubr.bf16.mxu0 %v814
    %2385 = vmatmul.mubr.bf16.gmra.mrb[0].mxu0 %v813
    %v2386 = vpop.f32.mrb[0].mxu0
    %v2387 = vadd.f32 %v2344, %v2386
    %v2388 = vpop.f32.mrb[0].mxu0
    %v2389 = vadd.f32 %v2346, %v2388
    %v2390 = vpop.f32.mrb[0].mxu0
    %v2391 = vadd.f32 %v2348, %v2390
    %v2392 = vpop.f32.mrb[0].mxu0
    %v2393 = vadd.f32 %v2350, %v2392
    %2394 = vdwg.mxu0
    %2395 = vmatprep.subr.bf16.mxu0 %v1780
    %2396 = vmatpush1.bf16.msra.mxu0 %v1779
    %2397 = vmatprep.subr.bf16.mxu0 %v1787
    %2398 = vmatpush1.bf16.msra.mxu0 %v1786
    %2399 = vmatprep.subr.bf16.mxu0 %v1794
    %2400 = vmatpush1.bf16.msra.mxu0 %v1793
    %2401 = vmatprep.subr.bf16.mxu0 %v1801
    %2402 = vmatpush1.bf16.msra.mxu0 %v1800
    %2403 = vmatprep.subr.bf16.mxu0 %v1808
    %2404 = vmatpush1.bf16.msra.mxu0 %v1807
    %2405 = vmatprep.subr.bf16.mxu0 %v1815
    %2406 = vmatpush1.bf16.msra.mxu0 %v1814
    %2407 = vmatprep.subr.bf16.mxu0 %v1822
    %2408 = vmatpush1.bf16.msra.mxu0 %v1821
    %2409 = vmatprep.subr.bf16.mxu0 %v1829
    %2410 = vmatpush1.bf16.msra.mxu0 %v1828
    %2411 = vmatprep.subr.bf16.mxu0 %v1836
    %2412 = vmatpush1.bf16.msra.mxu0 %v1835
    %2413 = vmatprep.subr.bf16.mxu0 %v1843
    %2414 = vmatpush1.bf16.msra.mxu0 %v1842
    %2415 = vmatprep.subr.bf16.mxu0 %v1850
    %2416 = vmatpush1.bf16.msra.mxu0 %v1849
    %2417 = vmatprep.subr.bf16.mxu0 %v1857
    %2418 = vmatpush1.bf16.msra.mxu0 %v1856
    %2419 = vmatprep.subr.bf16.mxu0 %v1864
    %2420 = vmatpush1.bf16.msra.mxu0 %v1863
    %2421 = vmatprep.subr.bf16.mxu0 %v1871
    %2422 = vmatpush1.bf16.msra.mxu0 %v1870
    %2423 = vmatprep.subr.bf16.mxu0 %v1878
    %2424 = vmatpush1.bf16.msra.mxu0 %v1877
    %2425 = vmatprep.subr.bf16.mxu0 %v1885
    %2426 = vmatpush1.bf16.msra.mxu0 %v1884
    %2427 = vmatprep.mubr.bf16.mxu0 %v812
    %2428 = vmatmul.mubr.bf16.gmra.mrb[0].mxu0 %v811
    %v2429 = vpop.f32.mrb[0].mxu0
    %v2430 = vadd.f32 0.0, %v2429
    %v2431 = vpop.f32.mrb[0].mxu0
    %v2432 = vadd.f32 0.0, %v2431
    %v2433 = vpop.f32.mrb[0].mxu0
    %v2434 = vadd.f32 0.0, %v2433
    %v2435 = vpop.f32.mrb[0].mxu0
    %v2436 = vadd.f32 0.0, %v2435
    %2437 = vdwg.mxu0
    %2438 = vmatprep.subr.bf16.mxu0 %v1892
    %2439 = vmatpush1.bf16.msra.mxu0 %v1891
    %2440 = vmatprep.subr.bf16.mxu0 %v1899
    %2441 = vmatpush1.bf16.msra.mxu0 %v1898
    %2442 = vmatprep.subr.bf16.mxu0 %v1906
    %2443 = vmatpush1.bf16.msra.mxu0 %v1905
    %2444 = vmatprep.subr.bf16.mxu0 %v1913
    %2445 = vmatpush1.bf16.msra.mxu0 %v1912
    %2446 = vmatprep.subr.bf16.mxu0 %v1920
    %2447 = vmatpush1.bf16.msra.mxu0 %v1919
    %2448 = vmatprep.subr.bf16.mxu0 %v1927
    %2449 = vmatpush1.bf16.msra.mxu0 %v1926
    %2450 = vmatprep.subr.bf16.mxu0 %v1934
    %2451 = vmatpush1.bf16.msra.mxu0 %v1933
    %2452 = vmatprep.subr.bf16.mxu0 %v1941
    %2453 = vmatpush1.bf16.msra.mxu0 %v1940
    %2454 = vmatprep.subr.bf16.mxu0 %v1948
    %2455 = vmatpush1.bf16.msra.mxu0 %v1947
    %2456 = vmatprep.subr.bf16.mxu0 %v1955
    %2457 = vmatpush1.bf16.msra.mxu0 %v1954
    %2458 = vmatprep.subr.bf16.mxu0 %v1962
    %2459 = vmatpush1.bf16.msra.mxu0 %v1961
    %2460 = vmatprep.subr.bf16.mxu0 %v1969
    %2461 = vmatpush1.bf16.msra.mxu0 %v1968
    %2462 = vmatprep.subr.bf16.mxu0 %v1976
    %2463 = vmatpush1.bf16.msra.mxu0 %v1975
    %2464 = vmatprep.subr.bf16.mxu0 %v1983
    %2465 = vmatpush1.bf16.msra.mxu0 %v1982
    %2466 = vmatprep.subr.bf16.mxu0 %v1990
    %2467 = vmatpush1.bf16.msra.mxu0 %v1989
    %2468 = vmatprep.subr.bf16.mxu0 %v1997
    %2469 = vmatpush1.bf16.msra.mxu0 %v1996
    %2470 = vmatprep.mubr.bf16.mxu0 %v814
    %2471 = vmatmul.mubr.bf16.gmra.mrb[0].mxu0 %v813
    %v2472 = vpop.f32.mrb[0].mxu0
    %v2473 = vadd.f32 %v2430, %v2472
    %v2474 = vpop.f32.mrb[0].mxu0
    %v2475 = vadd.f32 %v2432, %v2474
    %v2476 = vpop.f32.mrb[0].mxu0
    %v2477 = vadd.f32 %v2434, %v2476
    %v2478 = vpop.f32.mrb[0].mxu0
    %v2479 = vadd.f32 %v2436, %v2478
    %2480 = vdwg.mxu0
    %2481 = vmatprep.subr.bf16.mxu0 0
    %2482 = vmatpush1.bf16.msra.mxu0 %v1781
    %2483 = vmatprep.subr.bf16.mxu0 0
    %2484 = vmatpush1.bf16.msra.mxu0 %v1788
    %2485 = vmatprep.subr.bf16.mxu0 0
    %2486 = vmatpush1.bf16.msra.mxu0 %v1795
    %2487 = vmatprep.subr.bf16.mxu0 0
    %2488 = vmatpush1.bf16.msra.mxu0 %v1802
    %2489 = vmatprep.subr.bf16.mxu0 0
    %2490 = vmatpush1.bf16.msra.mxu0 %v1809
    %2491 = vmatprep.subr.bf16.mxu0 0
    %2492 = vmatpush1.bf16.msra.mxu0 %v1816
    %2493 = vmatprep.subr.bf16.mxu0 0
    %2494 = vmatpush1.bf16.msra.mxu0 %v1823
    %2495 = vmatprep.subr.bf16.mxu0 0
    %2496 = vmatpush1.bf16.msra.mxu0 %v1830
    %2497 = vmatprep.subr.bf16.mxu0 0
    %2498 = vmatpush1.bf16.msra.mxu0 %v1837
    %2499 = vmatprep.subr.bf16.mxu0 0
    %2500 = vmatpush1.bf16.msra.mxu0 %v1844
    %2501 = vmatprep.subr.bf16.mxu0 0
    %2502 = vmatpush1.bf16.msra.mxu0 %v1851
    %2503 = vmatprep.subr.bf16.mxu0 0
    %2504 = vmatpush1.bf16.msra.mxu0 %v1858
    %2505 = vmatprep.subr.bf16.mxu0 0
    %2506 = vmatpush1.bf16.msra.mxu0 %v1865
    %2507 = vmatprep.subr.bf16.mxu0 0
    %2508 = vmatpush1.bf16.msra.mxu0 %v1872
    %2509 = vmatprep.subr.bf16.mxu0 0
    %2510 = vmatpush1.bf16.msra.mxu0 %v1879
    %2511 = vmatprep.subr.bf16.mxu0 0
    %2512 = vmatpush1.bf16.msra.mxu0 %v1886
    %2513 = vmatprep.mubr.bf16.mxu0 %v812
    %2514 = vmatmul.mubr.bf16.gmra.mrb[0].mxu0 %v811
    %v2515 = vpop.f32.mrb[0].mxu0
    %v2516 = vadd.f32 0.0, %v2515
    %v2517 = vpop.f32.mrb[0].mxu0
    %v2518 = vpop.f32.mrb[0].mxu0
    %v2519 = vadd.f32 0.0, %v2518
    %v2520 = vpop.f32.mrb[0].mxu0
    %2521 = vdwg.mxu0
    %2522 = vmatprep.subr.bf16.mxu0 0
    %2523 = vmatpush1.bf16.msra.mxu0 %v1893
    %2524 = vmatprep.subr.bf16.mxu0 0
    %2525 = vmatpush1.bf16.msra.mxu0 %v1900
    %2526 = vmatprep.subr.bf16.mxu0 0
    %2527 = vmatpush1.bf16.msra.mxu0 %v1907
    %2528 = vmatprep.subr.bf16.mxu0 0
    %2529 = vmatpush1.bf16.msra.mxu0 %v1914
    %2530 = vmatprep.subr.bf16.mxu0 0
    %2531 = vmatpush1.bf16.msra.mxu0 %v1921
    %2532 = vmatprep.subr.bf16.mxu0 0
    %2533 = vmatpush1.bf16.msra.mxu0 %v1928
    %2534 = vmatprep.subr.bf16.mxu0 0
    %2535 = vmatpush1.bf16.msra.mxu0 %v1935
    %2536 = vmatprep.subr.bf16.mxu0 0
    %2537 = vmatpush1.bf16.msra.mxu0 %v1942
    %2538 = vmatprep.subr.bf16.mxu0 0
    %2539 = vmatpush1.bf16.msra.mxu0 %v1949
    %2540 = vmatprep.subr.bf16.mxu0 0
    %2541 = vmatpush1.bf16.msra.mxu0 %v1956
    %2542 = vmatprep.subr.bf16.mxu0 0
    %2543 = vmatpush1.bf16.msra.mxu0 %v1963
    %2544 = vmatprep.subr.bf16.mxu0 0
    %2545 = vmatpush1.bf16.msra.mxu0 %v1970
    %2546 = vmatprep.subr.bf16.mxu0 0
    %2547 = vmatpush1.bf16.msra.mxu0 %v1977
    %2548 = vmatprep.subr.bf16.mxu0 0
    %2549 = vmatpush1.bf16.msra.mxu0 %v1984
    %2550 = vmatprep.subr.bf16.mxu0 0
    %2551 = vmatpush1.bf16.msra.mxu0 %v1991
    %2552 = vmatprep.subr.bf16.mxu0 0
    %2553 = vmatpush1.bf16.msra.mxu0 %v1998
    %2554 = vmatprep.mubr.bf16.mxu0 %v814
    %2555 = vmatmul.mubr.bf16.gmra.mrb[0].mxu0 %v813
    %v2556 = vpop.f32.mrb[0].mxu0
    %v2557 = vadd.f32 %v2516, %v2556
    %v2558 = vpop.f32.mrb[0].mxu0
    %v2559 = vpop.f32.mrb[0].mxu0
    %v2560 = vadd.f32 %v2519, %v2559
    %v2561 = vpop.f32.mrb[0].mxu0
    %2562 = vdwg.mxu0
    %v2563 = vxor.u32 %v2301, 2147483648
    %v2564 = vxor.u32 %v2303, 2147483648
    %v2565 = vxor.u32 %v2387, 2147483648
    %v2566 = vxor.u32 %v2389, 2147483648
    %v2567 = vxor.u32 %v2473, 2147483648
    %v2568 = vxor.u32 %v2475, 2147483648
    %v2569 = vxor.u32 %v2557, 2147483648
    %v2570 = vxor.u32 %v2305, 2147483648
    %v2571 = vxor.u32 %v2307, 2147483648
    %v2572 = vxor.u32 %v2391, 2147483648
    %v2573 = vxor.u32 %v2393, 2147483648
    %v2574 = vxor.u32 %v2477, 2147483648
    %v2575 = vxor.u32 %v2479, 2147483648
    %v2576 = vxor.u32 %v2560, 2147483648
    %v2577 = vmul.f32 %v2563, 1.442695
    %v2578 = vpow.pop %v2577
    %v2579 = vmul.f32 %v2564, 1.442695
    %v2580 = vpow.pop %v2579
    %v2581 = vmul.f32 %v2565, 1.442695
    %v2582 = vpow.pop %v2581
    %v2583 = vmul.f32 %v2566, 1.442695
    %v2584 = vpow.pop %v2583
    %v2585 = vmul.f32 %v2567, 1.442695
    %v2586 = vpow.pop %v2585
    %v2587 = vmul.f32 %v2568, 1.442695
    %v2588 = vpow.pop %v2587
    %v2589 = vmul.f32 %v2569, 1.442695
    %v2590 = vpow.pop %v2589
    %v2591 = vmul.f32 %v2570, 1.442695
    %v2592 = vpow.pop %v2591
    %v2593 = vmul.f32 %v2571, 1.442695
    %v2594 = vpow.pop %v2593
    %v2595 = vmul.f32 %v2572, 1.442695
    %v2596 = vpow.pop %v2595
    %v2597 = vmul.f32 %v2573, 1.442695
    %v2598 = vpow.pop %v2597
    %v2599 = vmul.f32 %v2574, 1.442695
    %v2600 = vpow.pop %v2599
    %v2601 = vmul.f32 %v2575, 1.442695
    %v2602 = vpow.pop %v2601
    %v2603 = vmul.f32 %v2576, 1.442695
    %v2604 = vpow.pop %v2603
    %v2605 = vadd.f32 %v2578, 1.0
    %v2606 = vadd.f32 %v2580, 1.0
    %v2607 = vadd.f32 %v2582, 1.0
    %v2608 = vadd.f32 %v2584, 1.0
    %v2609 = vadd.f32 %v2586, 1.0
    %v2610 = vadd.f32 %v2588, 1.0
    %v2611 = vadd.f32 %v2590, 1.0
    %v2612 = vadd.f32 %v2592, 1.0
    %v2613 = vadd.f32 %v2594, 1.0
    %v2614 = vadd.f32 %v2596, 1.0
    %v2615 = vadd.f32 %v2598, 1.0
    %v2616 = vadd.f32 %v2600, 1.0
    %v2617 = vadd.f32 %v2602, 1.0
    %v2618 = vadd.f32 %v2604, 1.0
    %v2619 = vrcp.pop %v2605
    %v2620 = vmul.f32 1.0, %v2619
    %v2621 = vrcp.pop %v2606
    %v2622 = vmul.f32 1.0, %v2621
    %v2623 = vrcp.pop %v2607
    %v2624 = vmul.f32 1.0, %v2623
    %v2625 = vrcp.pop %v2608
    %v2626 = vmul.f32 1.0, %v2625
    %v2627 = vrcp.pop %v2609
    %v2628 = vmul.f32 1.0, %v2627
    %v2629 = vrcp.pop %v2610
    %v2630 = vmul.f32 1.0, %v2629
    %v2631 = vrcp.pop %v2611
    %v2632 = vmul.f32 1.0, %v2631
    %v2633 = vrcp.pop %v2612
    %v2634 = vmul.f32 1.0, %v2633
    %v2635 = vrcp.pop %v2613
    %v2636 = vmul.f32 1.0, %v2635
    %v2637 = vrcp.pop %v2614
    %v2638 = vmul.f32 1.0, %v2637
    %v2639 = vrcp.pop %v2615
    %v2640 = vmul.f32 1.0, %v2639
    %v2641 = vrcp.pop %v2616
    %v2642 = vmul.f32 1.0, %v2641
    %v2643 = vrcp.pop %v2617
    %v2644 = vmul.f32 1.0, %v2643
    %v2645 = vrcp.pop %v2618
    %v2646 = vmul.f32 1.0, %v2645
    %v2647 = vpack.c.bf16 %v2634, %v2620
    %v2648 = vpack.c.bf16 %v2636, %v2622
    %v2649 = vpack.c.bf16 %v2638, %v2624
    %v2650 = vpack.c.bf16 %v2640, %v2626
    %v2651 = vpack.c.bf16 %v2642, %v2628
    %v2652 = vpack.c.bf16 %v2644, %v2630
    %v2653 = vpack.c.bf16 %v2646, %v2632
    %v2661 = vunpack.c.l.b16 %v2647
    %v2662 = vunpack.c.l.b16 %v2648
    %v2663 = vunpack.c.l.b16 %v2649
    %v2664 = vunpack.c.l.b16 %v2650
    %v2665 = vunpack.c.l.b16 %v2651
    %v2666 = vunpack.c.l.b16 %v2652
    %v2667 = vunpack.c.l.b16 %v2653
    %v2668 = vunpack.c.h.b16 %v2647
    %v2669 = vunpack.c.h.b16 %v2648
    %v2670 = vunpack.c.h.b16 %v2649
    %v2671 = vunpack.c.h.b16 %v2650
    %v2672 = vunpack.c.h.b16 %v2651
    %v2673 = vunpack.c.h.b16 %v2652
    %v2674 = vunpack.c.h.b16 %v2653
    %v2675 = vpack.c.b16 %v2662, %v2661
    %v2676 = vpack.c.b16 %v2664, %v2663
    %v2677 = vpack.c.b16 %v2666, %v2665
    %v2678 = vpack.c.b16 %v2667, %v2667
    %v2679 = vpack.c.b16 %v2669, %v2668
    %v2680 = vpack.c.b16 %v2671, %v2670
    %v2681 = vpack.c.b16 %v2673, %v2672
    %v2682 = vpack.c.b16 %v2674, %v2674
    %2691 = vst [vmem:[%s7] sm:$0xff] %v2675
    %2692 = vst [vmem:[%s7 + $0x8] sm:$0xff] %v2676
    %2693 = vst [vmem:[%s7 + $0x10] sm:$0xff] %v2677
    %2694 = vst [vmem:[%s7 + $0x18] sm:$0xf] %v2678
    %2695 = vst [vmem:[%s7 + $0x1c] sm:$0xff] %v2679
    %2696 = vst [vmem:[%s7 + $0x24] sm:$0xff] %v2680
    %2697 = vst [vmem:[%s7 + $0x2c] sm:$0xff] %v2681
    %2698 = vst [vmem:[%s7 + $0x34] sm:$0xf] %v2682
    // Predicated region
    $region46: #{decoder_forward.1} parent=1 // pred_check
      _
    $region47: #{decoder_forward.1} parent=1 // pred_check_branch
      %2700 = sbr.rel (0) target = $region49
    $region48: #{decoder_forward.1} parent=1 // pred_region
      _
    $region49: #{decoder_forward.1} parent=1 // pred_fallthru
      _
    // Predicated region
    $region50: #{decoder_forward.1} parent=1 // pred_check
      _
    $region51: #{decoder_forward.1} parent=1 // pred_check_branch
      %2702 = sbr.rel (0) target = $region53
    $region52: #{decoder_forward.1} parent=1 // pred_region
      _
    $region53: #{decoder_forward.1} parent=1 // pred_fallthru
      _
    %2703 = vsyncpa [#allocation3], 1
    %2704 = vsyncpa [#allocation5], 1
    %2705 = vsyncpa [#allocation8], 1

</llo_original>
